<compile_context>
chip_gen: v6e
topology: v6e:2x2x1
jax: 0.10.0
libtpu: 0.0.40
codegen_flags: <defaults>
</compile_context>

<pallas_src>
import jax
import jax.numpy as jnp
from jax.experimental import pallas as pl
from jax.experimental.pallas import tpu as pltpu
import numpy as np

_LANE = 128  # TPU lane width; fc/out padded to this for unmasked stores.


# ----------------------------------------------------------------------------
# Pallas kernel: full LSTM stack + per-chunk FC accumulation.
# ----------------------------------------------------------------------------
def _qst_encoder_kernel(x_ref, w_ih_ref, w_hh_ref, b_ref, fc_w_ref, fc_b_ref,
                        out_ref, seq_buf, gates_buf):
    seq_len, batch, hidden = x_ref.shape
    num_layers = w_ih_ref.shape[0]
    embed_p = out_ref.shape[1]
    chunk = gates_buf.shape[0]
    # Static unroll only while the total step count is small; otherwise use a
    # fori_loop so code size / vreg live ranges stay bounded.
    unroll_time = (seq_len * num_layers) <= 64

    acc = jnp.zeros((batch, embed_p), jnp.float32)

    for layer in range(num_layers):                      # static unroll over layers
        w_ih_l = w_ih_ref[layer]                         # bf16 (H, 4H)
        w_hh_l = w_hh_ref[layer]                         # bf16 (H, 4H), no f32 copy
        b_l = b_ref[layer]                               # f32  (1, 4H)
        last_layer = (layer + 1 == num_layers)

        def step(gates_in, h, c):
            # Recurrent matmul in bf16 on the critical path; f32 accumulation,
            # f32 gate/state elementwise math (v5e-safe).
            gates = gates_in + jnp.dot(h.astype(jnp.bfloat16), w_hh_l,
                                       preferred_element_type=jnp.float32)
            # Gate columns are pre-permuted to [i | f | o | g]:
            sig = jax.nn.sigmoid(gates[:, :3 * hidden])  # one sigmoid for i,f,o
            i_g = sig[:, :hidden]
            f_g = sig[:, hidden:2 * hidden]
            o_g = sig[:, 2 * hidden:3 * hidden]
            g_g = jnp.tanh(gates[:, 3 * hidden:])        # one tanh for g
            c_new = f_g * c + i_g * g_g
            h_new = o_g * jnp.tanh(c_new)
            return h_new, c_new

        h = jnp.zeros((batch, hidden), jnp.float32)
        c = jnp.zeros((batch, hidden), jnp.float32)

        for c0 in range(0, seq_len, chunk):              # static loop over time chunks
            ch = min(chunk, seq_len - c0)
            # ---- Hoisted input projection for this chunk: ONE bf16 matmul ----
            if layer == 0:
                # tanh of the embedded question fused into the projection prep.
                x_in = jnp.tanh(
                    x_ref[c0:c0 + ch].astype(jnp.float32)).astype(jnp.bfloat16)
            else:
                x_in = seq_buf[c0:c0 + ch]               # bf16 already
            g_in = jnp.dot(x_in.reshape(ch * batch, hidden), w_ih_l,
                           preferred_element_type=jnp.float32)
            # Bias (b_ih + b_hh) folded in ONCE here, not per timestep.
            gates_buf[0:ch] = (g_in + b_l).reshape(ch, batch, 4 * hidden)

            if unroll_time:
                for tt in range(ch):                     # static unroll over time
                    h, c = step(gates_buf[tt], h, c)
                    if not last_layer:                   # last layer never re-read
                        seq_buf[c0 + tt] = h.astype(jnp.bfloat16)
            else:
                def body(tt, carry):
                    h_i, c_i = carry
                    h_i, c_i = step(gates_buf[tt], h_i, c_i)
                    if not last_layer:
                        seq_buf[c0 + tt] = h_i.astype(jnp.bfloat16)
                    return (h_i, c_i)
                h, c = jax.lax.fori_loop(0, ch, body, (h, c), unroll=2)

        # ---- Per-chunk FC accumulation (no lane-axis concatenate) -----------
        # Feature layout per batch row is [h_0, c_0, h_1, c_1, ...].
        off = 2 * layer * hidden
        acc = acc + jnp.dot(jnp.tanh(h).astype(jnp.bfloat16),
                            fc_w_ref[off:off + hidden, :],
                            preferred_element_type=jnp.float32)
        acc = acc + jnp.dot(jnp.tanh(c).astype(jnp.bfloat16),
                            fc_w_ref[off + hidden:off + 2 * hidden, :],
                            preferred_element_type=jnp.float32)

    out_ref[...] = (acc + fc_b_ref[...]).astype(out_ref.dtype)


def qst_encoder_pallas(question, kparams, *, max_batch_tile=128, time_chunk=16):
    """question: (batch, seq) int32 token ids; kparams from prepare_kernel_params."""
    # Embedding gather stays in XLA (data-dependent gather); gathering with
    # question.T yields the time-major layout directly (no f32 transpose pass).
    x = jnp.take(kparams["embedding"], question.T, axis=0).astype(jnp.bfloat16)

    seq_len, batch, hidden = x.shape
    embed_p = kparams["fc_w"].shape[1]
    embed_size = int(kparams["embed_size"])
    num_layers = kparams["w_ih"].shape[0]

    # Batch tile: fill the MXU M-dim; whole batch when it is small, otherwise
    # 128-wide tiles (batch padded to a multiple of the tile).
    if batch <= max_batch_tile:
        b_tile, pad_b = batch, 0
    else:
        b_tile = max_batch_tile
        pad_b = (-batch) % b_tile
        if pad_b:
            x = jnp.pad(x, ((0, 0), (0, pad_b), (0, 0)))
    batch_p = batch + pad_b
    grid = (batch_p // b_tile,)

    chunk = min(seq_len, time_chunk)
    # seq_buf only hands layer-l outputs to layer-(l+1); minimal when L == 1.
    seq_buf_rows = seq_len if num_layers > 1 else 1

    # Generation-aware VMEM budget: weights single-buffered, input/output
    # blocks double-buffered, plus scratches; capped by physical VMEM.
    bytes_weights = ((kparams["w_ih"].size + kparams["w_hh"].size
                      + kparams["fc_w"].size) * 2
                     + (kparams["b"].size + kparams["fc_b"].size) * 4)
    bytes_blocks = 2 * (seq_len * b_tile * hidden * 2) + 2 * (b_tile * embed_p * 4)
    bytes_scratch = (seq_buf_rows * b_tile * hidden * 2
                     + chunk * b_tile * 4 * hidden * 4)
    needed = bytes_weights + bytes_blocks + bytes_scratch
    try:
        phys_vmem = int(pltpu.get_tpu_info().vmem_capacity_bytes)
    except Exception:
        phys_vmem = 64 * 1024 * 1024          # conservative (v7x per-core)
    vmem_limit = int(min(phys_vmem * 0.8,
                         max(needed * 1.25 + (8 << 20), 32 << 20)))

    kernel = pl.pallas_call(
        _qst_encoder_kernel,
        out_shape=jax.ShapeDtypeStruct((batch_p, embed_p), jnp.float32),
        grid=grid,
        in_specs=[
            pl.BlockSpec((seq_len, b_tile, hidden), lambda i: (0, i, 0)),
            # Constant weights: whole array resident in VMEM, single-buffered
            # (no double-buffer duplication of large LSTM weights).
            pl.BlockSpec(memory_space=pltpu.MemorySpace.VMEM),   # w_ih
            pl.BlockSpec(memory_space=pltpu.MemorySpace.VMEM),   # w_hh
            pl.BlockSpec(memory_space=pltpu.MemorySpace.VMEM),   # b
            pl.BlockSpec(memory_space=pltpu.MemorySpace.VMEM),   # fc_w
            pl.BlockSpec(memory_space=pltpu.MemorySpace.VMEM),   # fc_b
        ],
        out_specs=pl.BlockSpec((b_tile, embed_p), lambda i: (i, 0)),
        scratch_shapes=[
            pltpu.VMEM((seq_buf_rows, b_tile, hidden), jnp.bfloat16),  # inter-layer h
            pltpu.VMEM((chunk, b_tile, 4 * hidden), jnp.float32),      # chunked gates
        ],
        compiler_params=pltpu.CompilerParams(
            dimension_semantics=("parallel",),
            vmem_limit_bytes=vmem_limit,
        ),
    )
    out = kernel(x, kparams["w_ih"], kparams["w_hh"], kparams["b"],
                 kparams["fc_w"], kparams["fc_b"])
    return out[:batch, :embed_size]


# ----------------------------------------------------------------------------
# Parameters: PyTorch-style f32 params + kernel-layout (bf16, gate-permuted).
# ----------------------------------------------------------------------------
def init_params(key, qst_vocab_size, word_embed_size, embed_size,
                num_layers, hidden_size):
    assert word_embed_size == hidden_size, (
        "kernel stacks per-layer W_ih; requires word_embed_size == hidden_size")
    ks = jax.random.split(key, 8)
    k = 1.0 / np.sqrt(hidden_size)
    u = lambda kk, shape: jax.random.uniform(kk, shape, jnp.float32, -k, k)

    embedding = jax.random.normal(ks[0], (qst_vocab_size, word_embed_size),
                                  jnp.float32)
    # Pre-transposed LSTM weights: (L, H_in, 4H) and (L, H, 4H), gate order i,f,g,o
    # (PyTorch nn.LSTM layout), combined b_ih + b_hh biases.
    w_ih = u(ks[1], (num_layers, hidden_size, 4 * hidden_size))
    w_hh = u(ks[2], (num_layers, hidden_size, 4 * hidden_size))
    b = u(ks[3], (num_layers, 1, 4 * hidden_size)) + u(
        ks[4], (num_layers, 1, 4 * hidden_size))
    fc_w = u(ks[5], (2 * num_layers * hidden_size, embed_size))
    fc_b = u(ks[6], (1, embed_size))
    return dict(embedding=embedding, w_ih=w_ih, w_hh=w_hh, b=b,
                fc_w=fc_w, fc_b=fc_b)


def _permute_gates_ifgo_to_ifog(w):
    """Reorder last-axis gate blocks from [i,f,g,o] (PyTorch) to [i,f,o,g]."""
    h = w.shape[-1] // 4
    i, f, g, o = (w[..., 0 * h:1 * h], w[..., 1 * h:2 * h],
                  w[..., 2 * h:3 * h], w[..., 3 * h:4 * h])
    return jnp.concatenate([i, f, o, g], axis=-1)


def prepare_kernel_params(params):
    """Kernel layout: gates regrouped to [i,f,o,g]; MXU operands in bf16;
    fc_w/fc_b zero-padded to a 128-lane multiple (lane-dense output store)."""
    embed_size = params["fc_w"].shape[1]
    embed_p = ((embed_size + _LANE - 1) // _LANE) * _LANE
    fc_w, fc_b = params["fc_w"], params["fc_b"]
    if embed_p != embed_size:
        fc_w = jnp.pad(fc_w, ((0, 0), (0, embed_p - embed_size)))
        fc_b = jnp.pad(fc_b, ((0, 0), (0, embed_p - embed_size)))
    return dict(
        embedding=params["embedding"],                                   # f32 gather
        w_ih=_permute_gates_ifgo_to_ifog(params["w_ih"]).astype(jnp.bfloat16),
        w_hh=_permute_gates_ifgo_to_ifog(params["w_hh"]).astype(jnp.bfloat16),
        b=_permute_gates_ifgo_to_ifog(params["b"]).astype(jnp.float32),
        fc_w=fc_w.astype(jnp.bfloat16),
        fc_b=fc_b.astype(jnp.float32),
        embed_size=embed_size,
    )


# ----------------------------------------------------------------------------
# Pure-JAX f32 reference (mirrors PyTorch nn.LSTM semantics).
# ----------------------------------------------------------------------------
def qst_encoder_ref(question, params):
    emb = jnp.take(params["embedding"], question, axis=0)
    x = jnp.tanh(jnp.transpose(emb, (1, 0, 2)))                  # (S, B, H)
    seq_len, batch, hidden = x.shape
    num_layers = params["w_ih"].shape[0]

    feats = []
    layer_in = x
    for l in range(num_layers):
        h = jnp.zeros((batch, hidden), jnp.float32)
        c = jnp.zeros((batch, hidden), jnp.float32)
        outs = []
        for t in range(seq_len):
            gates = (layer_in[t] @ params["w_ih"][l]
                     + h @ params["w_hh"][l] + params["b"][l])
            i_g = jax.nn.sigmoid(gates[:, 0 * hidden:1 * hidden])
            f_g = jax.nn.sigmoid(gates[:, 1 * hidden:2 * hidden])
            g_g = jnp.tanh(gates[:, 2 * hidden:3 * hidden])
            o_g = jax.nn.sigmoid(gates[:, 3 * hidden:4 * hidden])
            c = f_g * c + i_g * g_g
            h = o_g * jnp.tanh(c)
            outs.append(h)
        layer_in = jnp.stack(outs, axis=0)
        feats.extend([h, c])
    feature = jnp.tanh(jnp.concatenate(feats, axis=-1))
    return feature @ params["fc_w"] + params["fc_b"]


if __name__ == "__main__":
    qst_vocab_size = 50
    word_embed_size = 32
    hidden_size = 32
    num_layers = 2
    embed_size = 32
    batch, seq = 2, 8

    key = jax.random.PRNGKey(0)
    pkey, qkey = jax.random.split(key)
    params = init_params(pkey, qst_vocab_size, word_embed_size, embed_size,
                         num_layers, hidden_size)
    kparams = prepare_kernel_params(params)
    question = jax.random.randint(qkey, (batch, seq), 0, qst_vocab_size,
                                  dtype=jnp.int32)

    out = qst_encoder_pallas(question, kparams)
    out = jax.block_until_ready(out)

    ref = qst_encoder_ref(question, params)
    # Tolerance vs. the all-f32 reference: kernel uses bf16 MXU operands
    # (weights, embedded sequence, and now the recurrent h operand) with f32
    # accumulation; embeddings are rounded to bf16 before the tanh.
    np.testing.assert_allclose(np.asarray(out), np.asarray(ref),
                               rtol=3e-2, atol=3e-2)
    assert out.shape == (batch, embed_size)
    print("KERNEL_OK")
</pallas_src>

<mosaic_0001>
module attributes {stable_mosaic.version = 11 : i64} {
  func.func @_qst_encoder_kernel(%arg0: i32, %arg1: memref<8x2x32xbf16, #tpu.memory_space<vmem>>, %arg2: memref<2x32x128xbf16, #tpu.memory_space<vmem>>, %arg3: memref<2x32x128xbf16, #tpu.memory_space<vmem>>, %arg4: memref<2x1x128xf32, #tpu.memory_space<vmem>>, %arg5: memref<128x128xbf16, #tpu.memory_space<vmem>>, %arg6: memref<1x128xf32, #tpu.memory_space<vmem>>, %arg7: memref<2x128xf32, #tpu.memory_space<vmem>>, %arg8: memref<8x2x32xbf16, #tpu.memory_space<vmem>>, %arg9: memref<8x2x128xf32, #tpu.memory_space<vmem>>) attributes {dimension_semantics = [#tpu.dimension_semantics<parallel>], iteration_bounds = array<i64: 1>, scalar_prefetch = 0 : i64, scratch_operands = 2 : i64, tpu.core_type = #tpu.core_type<tc>, window_params = [{transform_indices = @transform_0, window_bounds = array<i64: 8, 2, 32>}, {pipeline_mode = #tpu.pipeline_mode<synchronous>, transform_indices = @transform_1, window_bounds = array<i64: 2, 32, 128>}, {pipeline_mode = #tpu.pipeline_mode<synchronous>, transform_indices = @transform_2, window_bounds = array<i64: 2, 32, 128>}, {pipeline_mode = #tpu.pipeline_mode<synchronous>, transform_indices = @transform_3, window_bounds = array<i64: 2, 1, 128>}, {pipeline_mode = #tpu.pipeline_mode<synchronous>, transform_indices = @transform_4, window_bounds = array<i64: 128, 128>}, {pipeline_mode = #tpu.pipeline_mode<synchronous>, transform_indices = @transform_5, window_bounds = array<i64: 1, 128>}, {transform_indices = @transform_6, window_bounds = array<i64: 2, 128>}]} {
    %cst = arith.constant 0.000000e+00 : f32
    %0 = vector.broadcast %cst : f32 to vector<2x128xf32>
    %c0 = arith.constant 0 : index
    %c0_0 = arith.constant 0 : index
    %c0_1 = arith.constant 0 : index
    %1 = vector.load %arg2[%c0, %c0_0, %c0_1] : memref<2x32x128xbf16, #tpu.memory_space<vmem>>, vector<1x32x128xbf16>
    %2 = vector.shape_cast %1 : vector<1x32x128xbf16> to vector<32x128xbf16>
    %c0_2 = arith.constant 0 : index
    %c0_3 = arith.constant 0 : index
    %c0_4 = arith.constant 0 : index
    %3 = vector.load %arg3[%c0_2, %c0_3, %c0_4] : memref<2x32x128xbf16, #tpu.memory_space<vmem>>, vector<1x32x128xbf16>
    %4 = vector.shape_cast %3 : vector<1x32x128xbf16> to vector<32x128xbf16>
    %c0_5 = arith.constant 0 : index
    %c0_6 = arith.constant 0 : index
    %c0_7 = arith.constant 0 : index
    %5 = vector.load %arg4[%c0_5, %c0_6, %c0_7] : memref<2x1x128xf32, #tpu.memory_space<vmem>>, vector<1x1x128xf32>
    %6 = vector.shape_cast %5 : vector<1x1x128xf32> to vector<1x128xf32>
    %cst_8 = arith.constant 0.000000e+00 : f32
    %7 = vector.broadcast %cst_8 : f32 to vector<2x32xf32>
    %cst_9 = arith.constant 0.000000e+00 : f32
    %8 = vector.broadcast %cst_9 : f32 to vector<2x32xf32>
    %c0_10 = arith.constant 0 : index
    %c0_11 = arith.constant 0 : index
    %c0_12 = arith.constant 0 : index
    %9 = vector.load %arg1[%c0_10, %c0_11, %c0_12] : memref<8x2x32xbf16, #tpu.memory_space<vmem>>, vector<8x2x32xbf16>
    %10 = arith.extf %9 : vector<8x2x32xbf16> to vector<8x2x32xf32>
    %11 = math.tanh %10 : vector<8x2x32xf32>
    %12 = arith.truncf %11 : vector<8x2x32xf32> to vector<8x2x32xbf16>
    %13 = vector.shape_cast %12 : vector<8x2x32xbf16> to vector<16x32xbf16>
    %cst_13 = arith.constant dense<0.000000e+00> : vector<16x128xf32>
    %14 = tpu.matmul %13, %2, %cst_13 {dimension_numbers = #tpu.dot_dimension_numbers<[1], [0], [0], [1], [0, 0, 1, 1], [], []>} : vector<16x32xbf16>, vector<32x128xbf16>, vector<16x128xf32> -> vector<16x128xf32>
    %15 = vector.broadcast %6 : vector<1x128xf32> to vector<16x128xf32>
    %16 = arith.addf %14, %15 : vector<16x128xf32>
    %17 = vector.shape_cast %16 : vector<16x128xf32> to vector<8x2x128xf32>
    %c0_14 = arith.constant 0 : index
    %c0_15 = arith.constant 0 : index
    %c0_16 = arith.constant 0 : index
    %18 = vector.load %arg9[%c0_14, %c0_15, %c0_16] : memref<8x2x128xf32, #tpu.memory_space<vmem>>, vector<8x2x128xf32>
    tpu.vector_store %arg9[%c0_14, %c0_15, %c0_16], %17 {strides = array<i32>} : memref<8x2x128xf32, #tpu.memory_space<vmem>>, vector<8x2x128xf32>,
    %c0_17 = arith.constant 0 : index
    %c0_18 = arith.constant 0 : index
    %c0_19 = arith.constant 0 : index
    %19 = vector.load %arg9[%c0_17, %c0_18, %c0_19] : memref<8x2x128xf32, #tpu.memory_space<vmem>>, vector<1x2x128xf32>
    %20 = vector.shape_cast %19 : vector<1x2x128xf32> to vector<2x128xf32>
    %21 = arith.truncf %7 : vector<2x32xf32> to vector<2x32xbf16>
    %cst_20 = arith.constant dense<0.000000e+00> : vector<2x128xf32>
    %22 = tpu.matmul %21, %4, %cst_20 {dimension_numbers = #tpu.dot_dimension_numbers<[1], [0], [0], [1], [0, 0, 1, 1], [], []>} : vector<2x32xbf16>, vector<32x128xbf16>, vector<2x128xf32> -> vector<2x128xf32>
    %23 = arith.addf %20, %22 : vector<2x128xf32>
    %24 = vector.extract_strided_slice %23 {offsets = [0, 0], sizes = [2, 96], strides = [1, 1]} : vector<2x128xf32> to vector<2x96xf32>
    %25 = arith.negf %24 : vector<2x96xf32>
    %26 = math.exp %25 : vector<2x96xf32>
    %cst_21 = arith.constant 1.000000e+00 : f32
    %27 = vector.broadcast %cst_21 : f32 to vector<2x96xf32>
    %28 = arith.addf %27, %26 : vector<2x96xf32>
    %29 = arith.divf %27, %28 : vector<2x96xf32>
    %30 = vector.extract_strided_slice %29 {offsets = [0, 0], sizes = [2, 32], strides = [1, 1]} : vector<2x96xf32> to vector<2x32xf32>
    %31 = vector.extract_strided_slice %29 {offsets = [0, 32], sizes = [2, 32], strides = [1, 1]} : vector<2x96xf32> to vector<2x32xf32>
    %32 = vector.extract_strided_slice %29 {offsets = [0, 64], sizes = [2, 32], strides = [1, 1]} : vector<2x96xf32> to vector<2x32xf32>
    %33 = vector.extract_strided_slice %23 {offsets = [0, 96], sizes = [2, 32], strides = [1, 1]} : vector<2x128xf32> to vector<2x32xf32>
    %34 = math.tanh %33 : vector<2x32xf32>
    %35 = arith.mulf %31, %8 : vector<2x32xf32>
    %36 = arith.mulf %30, %34 : vector<2x32xf32>
    %37 = arith.addf %35, %36 : vector<2x32xf32>
    %38 = math.tanh %37 : vector<2x32xf32>
    %39 = arith.mulf %32, %38 : vector<2x32xf32>
    %40 = arith.truncf %39 : vector<2x32xf32> to vector<2x32xbf16>
    %c0_22 = arith.constant 0 : index
    %c0_23 = arith.constant 0 : index
    %c0_24 = arith.constant 0 : index
    %41 = vector.load %arg8[%c0_22, %c0_23, %c0_24] : memref<8x2x32xbf16, #tpu.memory_space<vmem>>, vector<1x2x32xbf16>
    %42 = vector.shape_cast %41 : vector<1x2x32xbf16> to vector<2x32xbf16>
    %43 = vector.shape_cast %40 : vector<2x32xbf16> to vector<1x2x32xbf16>
    tpu.vector_store %arg8[%c0_22, %c0_23, %c0_24], %43 {strides = array<i32>} : memref<8x2x32xbf16, #tpu.memory_space<vmem>>, vector<1x2x32xbf16>,
    %c1 = arith.constant 1 : index
    %c0_25 = arith.constant 0 : index
    %c0_26 = arith.constant 0 : index
    %44 = vector.load %arg9[%c1, %c0_25, %c0_26] : memref<8x2x128xf32, #tpu.memory_space<vmem>>, vector<1x2x128xf32>
    %45 = vector.shape_cast %44 : vector<1x2x128xf32> to vector<2x128xf32>
    %46 = arith.truncf %39 : vector<2x32xf32> to vector<2x32xbf16>
    %cst_27 = arith.constant dense<0.000000e+00> : vector<2x128xf32>
    %47 = tpu.matmul %46, %4, %cst_27 {dimension_numbers = #tpu.dot_dimension_numbers<[1], [0], [0], [1], [0, 0, 1, 1], [], []>} : vector<2x32xbf16>, vector<32x128xbf16>, vector<2x128xf32> -> vector<2x128xf32>
    %48 = arith.addf %45, %47 : vector<2x128xf32>
    %49 = vector.extract_strided_slice %48 {offsets = [0, 0], sizes = [2, 96], strides = [1, 1]} : vector<2x128xf32> to vector<2x96xf32>
    %50 = arith.negf %49 : vector<2x96xf32>
    %51 = math.exp %50 : vector<2x96xf32>
    %cst_28 = arith.constant 1.000000e+00 : f32
    %52 = vector.broadcast %cst_28 : f32 to vector<2x96xf32>
    %53 = arith.addf %52, %51 : vector<2x96xf32>
    %54 = arith.divf %52, %53 : vector<2x96xf32>
    %55 = vector.extract_strided_slice %54 {offsets = [0, 0], sizes = [2, 32], strides = [1, 1]} : vector<2x96xf32> to vector<2x32xf32>
    %56 = vector.extract_strided_slice %54 {offsets = [0, 32], sizes = [2, 32], strides = [1, 1]} : vector<2x96xf32> to vector<2x32xf32>
    %57 = vector.extract_strided_slice %54 {offsets = [0, 64], sizes = [2, 32], strides = [1, 1]} : vector<2x96xf32> to vector<2x32xf32>
    %58 = vector.extract_strided_slice %48 {offsets = [0, 96], sizes = [2, 32], strides = [1, 1]} : vector<2x128xf32> to vector<2x32xf32>
    %59 = math.tanh %58 : vector<2x32xf32>
    %60 = arith.mulf %56, %37 : vector<2x32xf32>
    %61 = arith.mulf %55, %59 : vector<2x32xf32>
    %62 = arith.addf %60, %61 : vector<2x32xf32>
    %63 = math.tanh %62 : vector<2x32xf32>
    %64 = arith.mulf %57, %63 : vector<2x32xf32>
    %65 = arith.truncf %64 : vector<2x32xf32> to vector<2x32xbf16>
    %c1_29 = arith.constant 1 : index
    %c0_30 = arith.constant 0 : index
    %c0_31 = arith.constant 0 : index
    %66 = vector.load %arg8[%c1_29, %c0_30, %c0_31] : memref<8x2x32xbf16, #tpu.memory_space<vmem>>, vector<1x2x32xbf16>
    %67 = vector.shape_cast %66 : vector<1x2x32xbf16> to vector<2x32xbf16>
    %68 = vector.shape_cast %65 : vector<2x32xbf16> to vector<1x2x32xbf16>
    tpu.vector_store %arg8[%c1_29, %c0_30, %c0_31], %68 {strides = array<i32>} : memref<8x2x32xbf16, #tpu.memory_space<vmem>>, vector<1x2x32xbf16>,
    %c2 = arith.constant 2 : index
    %c0_32 = arith.constant 0 : index
    %c0_33 = arith.constant 0 : index
    %69 = vector.load %arg9[%c2, %c0_32, %c0_33] : memref<8x2x128xf32, #tpu.memory_space<vmem>>, vector<1x2x128xf32>
    %70 = vector.shape_cast %69 : vector<1x2x128xf32> to vector<2x128xf32>
    %71 = arith.truncf %64 : vector<2x32xf32> to vector<2x32xbf16>
    %cst_34 = arith.constant dense<0.000000e+00> : vector<2x128xf32>
    %72 = tpu.matmul %71, %4, %cst_34 {dimension_numbers = #tpu.dot_dimension_numbers<[1], [0], [0], [1], [0, 0, 1, 1], [], []>} : vector<2x32xbf16>, vector<32x128xbf16>, vector<2x128xf32> -> vector<2x128xf32>
    %73 = arith.addf %70, %72 : vector<2x128xf32>
    %74 = vector.extract_strided_slice %73 {offsets = [0, 0], sizes = [2, 96], strides = [1, 1]} : vector<2x128xf32> to vector<2x96xf32>
    %75 = arith.negf %74 : vector<2x96xf32>
    %76 = math.exp %75 : vector<2x96xf32>
    %cst_35 = arith.constant 1.000000e+00 : f32
    %77 = vector.broadcast %cst_35 : f32 to vector<2x96xf32>
    %78 = arith.addf %77, %76 : vector<2x96xf32>
    %79 = arith.divf %77, %78 : vector<2x96xf32>
    %80 = vector.extract_strided_slice %79 {offsets = [0, 0], sizes = [2, 32], strides = [1, 1]} : vector<2x96xf32> to vector<2x32xf32>
    %81 = vector.extract_strided_slice %79 {offsets = [0, 32], sizes = [2, 32], strides = [1, 1]} : vector<2x96xf32> to vector<2x32xf32>
    %82 = vector.extract_strided_slice %79 {offsets = [0, 64], sizes = [2, 32], strides = [1, 1]} : vector<2x96xf32> to vector<2x32xf32>
    %83 = vector.extract_strided_slice %73 {offsets = [0, 96], sizes = [2, 32], strides = [1, 1]} : vector<2x128xf32> to vector<2x32xf32>
    %84 = math.tanh %83 : vector<2x32xf32>
    %85 = arith.mulf %81, %62 : vector<2x32xf32>
    %86 = arith.mulf %80, %84 : vector<2x32xf32>
    %87 = arith.addf %85, %86 : vector<2x32xf32>
    %88 = math.tanh %87 : vector<2x32xf32>
    %89 = arith.mulf %82, %88 : vector<2x32xf32>
    %90 = arith.truncf %89 : vector<2x32xf32> to vector<2x32xbf16>
    %c2_36 = arith.constant 2 : index
    %c0_37 = arith.constant 0 : index
    %c0_38 = arith.constant 0 : index
    %91 = vector.load %arg8[%c2_36, %c0_37, %c0_38] : memref<8x2x32xbf16, #tpu.memory_space<vmem>>, vector<1x2x32xbf16>
    %92 = vector.shape_cast %91 : vector<1x2x32xbf16> to vector<2x32xbf16>
    %93 = vector.shape_cast %90 : vector<2x32xbf16> to vector<1x2x32xbf16>
    tpu.vector_store %arg8[%c2_36, %c0_37, %c0_38], %93 {strides = array<i32>} : memref<8x2x32xbf16, #tpu.memory_space<vmem>>, vector<1x2x32xbf16>,
    %c3 = arith.constant 3 : index
    %c0_39 = arith.constant 0 : index
    %c0_40 = arith.constant 0 : index
    %94 = vector.load %arg9[%c3, %c0_39, %c0_40] : memref<8x2x128xf32, #tpu.memory_space<vmem>>, vector<1x2x128xf32>
    %95 = vector.shape_cast %94 : vector<1x2x128xf32> to vector<2x128xf32>
    %96 = arith.truncf %89 : vector<2x32xf32> to vector<2x32xbf16>
    %cst_41 = arith.constant dense<0.000000e+00> : vector<2x128xf32>
    %97 = tpu.matmul %96, %4, %cst_41 {dimension_numbers = #tpu.dot_dimension_numbers<[1], [0], [0], [1], [0, 0, 1, 1], [], []>} : vector<2x32xbf16>, vector<32x128xbf16>, vector<2x128xf32> -> vector<2x128xf32>
    %98 = arith.addf %95, %97 : vector<2x128xf32>
    %99 = vector.extract_strided_slice %98 {offsets = [0, 0], sizes = [2, 96], strides = [1, 1]} : vector<2x128xf32> to vector<2x96xf32>
    %100 = arith.negf %99 : vector<2x96xf32>
    %101 = math.exp %100 : vector<2x96xf32>
    %cst_42 = arith.constant 1.000000e+00 : f32
    %102 = vector.broadcast %cst_42 : f32 to vector<2x96xf32>
    %103 = arith.addf %102, %101 : vector<2x96xf32>
    %104 = arith.divf %102, %103 : vector<2x96xf32>
    %105 = vector.extract_strided_slice %104 {offsets = [0, 0], sizes = [2, 32], strides = [1, 1]} : vector<2x96xf32> to vector<2x32xf32>
    %106 = vector.extract_strided_slice %104 {offsets = [0, 32], sizes = [2, 32], strides = [1, 1]} : vector<2x96xf32> to vector<2x32xf32>
    %107 = vector.extract_strided_slice %104 {offsets = [0, 64], sizes = [2, 32], strides = [1, 1]} : vector<2x96xf32> to vector<2x32xf32>
    %108 = vector.extract_strided_slice %98 {offsets = [0, 96], sizes = [2, 32], strides = [1, 1]} : vector<2x128xf32> to vector<2x32xf32>
    %109 = math.tanh %108 : vector<2x32xf32>
    %110 = arith.mulf %106, %87 : vector<2x32xf32>
    %111 = arith.mulf %105, %109 : vector<2x32xf32>
    %112 = arith.addf %110, %111 : vector<2x32xf32>
    %113 = math.tanh %112 : vector<2x32xf32>
    %114 = arith.mulf %107, %113 : vector<2x32xf32>
    %115 = arith.truncf %114 : vector<2x32xf32> to vector<2x32xbf16>
    %c3_43 = arith.constant 3 : index
    %c0_44 = arith.constant 0 : index
    %c0_45 = arith.constant 0 : index
    %116 = vector.load %arg8[%c3_43, %c0_44, %c0_45] : memref<8x2x32xbf16, #tpu.memory_space<vmem>>, vector<1x2x32xbf16>
    %117 = vector.shape_cast %116 : vector<1x2x32xbf16> to vector<2x32xbf16>
    %118 = vector.shape_cast %115 : vector<2x32xbf16> to vector<1x2x32xbf16>
    tpu.vector_store %arg8[%c3_43, %c0_44, %c0_45], %118 {strides = array<i32>} : memref<8x2x32xbf16, #tpu.memory_space<vmem>>, vector<1x2x32xbf16>,
    %c4 = arith.constant 4 : index
    %c0_46 = arith.constant 0 : index
    %c0_47 = arith.constant 0 : index
    %119 = vector.load %arg9[%c4, %c0_46, %c0_47] : memref<8x2x128xf32, #tpu.memory_space<vmem>>, vector<1x2x128xf32>
    %120 = vector.shape_cast %119 : vector<1x2x128xf32> to vector<2x128xf32>
    %121 = arith.truncf %114 : vector<2x32xf32> to vector<2x32xbf16>
    %cst_48 = arith.constant dense<0.000000e+00> : vector<2x128xf32>
    %122 = tpu.matmul %121, %4, %cst_48 {dimension_numbers = #tpu.dot_dimension_numbers<[1], [0], [0], [1], [0, 0, 1, 1], [], []>} : vector<2x32xbf16>, vector<32x128xbf16>, vector<2x128xf32> -> vector<2x128xf32>
    %123 = arith.addf %120, %122 : vector<2x128xf32>
    %124 = vector.extract_strided_slice %123 {offsets = [0, 0], sizes = [2, 96], strides = [1, 1]} : vector<2x128xf32> to vector<2x96xf32>
    %125 = arith.negf %124 : vector<2x96xf32>
    %126 = math.exp %125 : vector<2x96xf32>
    %cst_49 = arith.constant 1.000000e+00 : f32
    %127 = vector.broadcast %cst_49 : f32 to vector<2x96xf32>
    %128 = arith.addf %127, %126 : vector<2x96xf32>
    %129 = arith.divf %127, %128 : vector<2x96xf32>
    %130 = vector.extract_strided_slice %129 {offsets = [0, 0], sizes = [2, 32], strides = [1, 1]} : vector<2x96xf32> to vector<2x32xf32>
    %131 = vector.extract_strided_slice %129 {offsets = [0, 32], sizes = [2, 32], strides = [1, 1]} : vector<2x96xf32> to vector<2x32xf32>
    %132 = vector.extract_strided_slice %129 {offsets = [0, 64], sizes = [2, 32], strides = [1, 1]} : vector<2x96xf32> to vector<2x32xf32>
    %133 = vector.extract_strided_slice %123 {offsets = [0, 96], sizes = [2, 32], strides = [1, 1]} : vector<2x128xf32> to vector<2x32xf32>
    %134 = math.tanh %133 : vector<2x32xf32>
    %135 = arith.mulf %131, %112 : vector<2x32xf32>
    %136 = arith.mulf %130, %134 : vector<2x32xf32>
    %137 = arith.addf %135, %136 : vector<2x32xf32>
    %138 = math.tanh %137 : vector<2x32xf32>
    %139 = arith.mulf %132, %138 : vector<2x32xf32>
    %140 = arith.truncf %139 : vector<2x32xf32> to vector<2x32xbf16>
    %c4_50 = arith.constant 4 : index
    %c0_51 = arith.constant 0 : index
    %c0_52 = arith.constant 0 : index
    %141 = vector.load %arg8[%c4_50, %c0_51, %c0_52] : memref<8x2x32xbf16, #tpu.memory_space<vmem>>, vector<1x2x32xbf16>
    %142 = vector.shape_cast %141 : vector<1x2x32xbf16> to vector<2x32xbf16>
    %143 = vector.shape_cast %140 : vector<2x32xbf16> to vector<1x2x32xbf16>
    tpu.vector_store %arg8[%c4_50, %c0_51, %c0_52], %143 {strides = array<i32>} : memref<8x2x32xbf16, #tpu.memory_space<vmem>>, vector<1x2x32xbf16>,
    %c5 = arith.constant 5 : index
    %c0_53 = arith.constant 0 : index
    %c0_54 = arith.constant 0 : index
    %144 = vector.load %arg9[%c5, %c0_53, %c0_54] : memref<8x2x128xf32, #tpu.memory_space<vmem>>, vector<1x2x128xf32>
    %145 = vector.shape_cast %144 : vector<1x2x128xf32> to vector<2x128xf32>
    %146 = arith.truncf %139 : vector<2x32xf32> to vector<2x32xbf16>
    %cst_55 = arith.constant dense<0.000000e+00> : vector<2x128xf32>
    %147 = tpu.matmul %146, %4, %cst_55 {dimension_numbers = #tpu.dot_dimension_numbers<[1], [0], [0], [1], [0, 0, 1, 1], [], []>} : vector<2x32xbf16>, vector<32x128xbf16>, vector<2x128xf32> -> vector<2x128xf32>
    %148 = arith.addf %145, %147 : vector<2x128xf32>
    %149 = vector.extract_strided_slice %148 {offsets = [0, 0], sizes = [2, 96], strides = [1, 1]} : vector<2x128xf32> to vector<2x96xf32>
    %150 = arith.negf %149 : vector<2x96xf32>
    %151 = math.exp %150 : vector<2x96xf32>
    %cst_56 = arith.constant 1.000000e+00 : f32
    %152 = vector.broadcast %cst_56 : f32 to vector<2x96xf32>
    %153 = arith.addf %152, %151 : vector<2x96xf32>
    %154 = arith.divf %152, %153 : vector<2x96xf32>
    %155 = vector.extract_strided_slice %154 {offsets = [0, 0], sizes = [2, 32], strides = [1, 1]} : vector<2x96xf32> to vector<2x32xf32>
    %156 = vector.extract_strided_slice %154 {offsets = [0, 32], sizes = [2, 32], strides = [1, 1]} : vector<2x96xf32> to vector<2x32xf32>
    %157 = vector.extract_strided_slice %154 {offsets = [0, 64], sizes = [2, 32], strides = [1, 1]} : vector<2x96xf32> to vector<2x32xf32>
    %158 = vector.extract_strided_slice %148 {offsets = [0, 96], sizes = [2, 32], strides = [1, 1]} : vector<2x128xf32> to vector<2x32xf32>
    %159 = math.tanh %158 : vector<2x32xf32>
    %160 = arith.mulf %156, %137 : vector<2x32xf32>
    %161 = arith.mulf %155, %159 : vector<2x32xf32>
    %162 = arith.addf %160, %161 : vector<2x32xf32>
    %163 = math.tanh %162 : vector<2x32xf32>
    %164 = arith.mulf %157, %163 : vector<2x32xf32>
    %165 = arith.truncf %164 : vector<2x32xf32> to vector<2x32xbf16>
    %c5_57 = arith.constant 5 : index
    %c0_58 = arith.constant 0 : index
    %c0_59 = arith.constant 0 : index
    %166 = vector.load %arg8[%c5_57, %c0_58, %c0_59] : memref<8x2x32xbf16, #tpu.memory_space<vmem>>, vector<1x2x32xbf16>
    %167 = vector.shape_cast %166 : vector<1x2x32xbf16> to vector<2x32xbf16>
    %168 = vector.shape_cast %165 : vector<2x32xbf16> to vector<1x2x32xbf16>
    tpu.vector_store %arg8[%c5_57, %c0_58, %c0_59], %168 {strides = array<i32>} : memref<8x2x32xbf16, #tpu.memory_space<vmem>>, vector<1x2x32xbf16>,
    %c6 = arith.constant 6 : index
    %c0_60 = arith.constant 0 : index
    %c0_61 = arith.constant 0 : index
    %169 = vector.load %arg9[%c6, %c0_60, %c0_61] : memref<8x2x128xf32, #tpu.memory_space<vmem>>, vector<1x2x128xf32>
    %170 = vector.shape_cast %169 : vector<1x2x128xf32> to vector<2x128xf32>
    %171 = arith.truncf %164 : vector<2x32xf32> to vector<2x32xbf16>
    %cst_62 = arith.constant dense<0.000000e+00> : vector<2x128xf32>
    %172 = tpu.matmul %171, %4, %cst_62 {dimension_numbers = #tpu.dot_dimension_numbers<[1], [0], [0], [1], [0, 0, 1, 1], [], []>} : vector<2x32xbf16>, vector<32x128xbf16>, vector<2x128xf32> -> vector<2x128xf32>
    %173 = arith.addf %170, %172 : vector<2x128xf32>
    %174 = vector.extract_strided_slice %173 {offsets = [0, 0], sizes = [2, 96], strides = [1, 1]} : vector<2x128xf32> to vector<2x96xf32>
    %175 = arith.negf %174 : vector<2x96xf32>
    %176 = math.exp %175 : vector<2x96xf32>
    %cst_63 = arith.constant 1.000000e+00 : f32
    %177 = vector.broadcast %cst_63 : f32 to vector<2x96xf32>
    %178 = arith.addf %177, %176 : vector<2x96xf32>
    %179 = arith.divf %177, %178 : vector<2x96xf32>
    %180 = vector.extract_strided_slice %179 {offsets = [0, 0], sizes = [2, 32], strides = [1, 1]} : vector<2x96xf32> to vector<2x32xf32>
    %181 = vector.extract_strided_slice %179 {offsets = [0, 32], sizes = [2, 32], strides = [1, 1]} : vector<2x96xf32> to vector<2x32xf32>
    %182 = vector.extract_strided_slice %179 {offsets = [0, 64], sizes = [2, 32], strides = [1, 1]} : vector<2x96xf32> to vector<2x32xf32>
    %183 = vector.extract_strided_slice %173 {offsets = [0, 96], sizes = [2, 32], strides = [1, 1]} : vector<2x128xf32> to vector<2x32xf32>
    %184 = math.tanh %183 : vector<2x32xf32>
    %185 = arith.mulf %181, %162 : vector<2x32xf32>
    %186 = arith.mulf %180, %184 : vector<2x32xf32>
    %187 = arith.addf %185, %186 : vector<2x32xf32>
    %188 = math.tanh %187 : vector<2x32xf32>
    %189 = arith.mulf %182, %188 : vector<2x32xf32>
    %190 = arith.truncf %189 : vector<2x32xf32> to vector<2x32xbf16>
    %c6_64 = arith.constant 6 : index
    %c0_65 = arith.constant 0 : index
    %c0_66 = arith.constant 0 : index
    %191 = vector.load %arg8[%c6_64, %c0_65, %c0_66] : memref<8x2x32xbf16, #tpu.memory_space<vmem>>, vector<1x2x32xbf16>
    %192 = vector.shape_cast %191 : vector<1x2x32xbf16> to vector<2x32xbf16>
    %193 = vector.shape_cast %190 : vector<2x32xbf16> to vector<1x2x32xbf16>
    tpu.vector_store %arg8[%c6_64, %c0_65, %c0_66], %193 {strides = array<i32>} : memref<8x2x32xbf16, #tpu.memory_space<vmem>>, vector<1x2x32xbf16>,
    %c7 = arith.constant 7 : index
    %c0_67 = arith.constant 0 : index
    %c0_68 = arith.constant 0 : index
    %194 = vector.load %arg9[%c7, %c0_67, %c0_68] : memref<8x2x128xf32, #tpu.memory_space<vmem>>, vector<1x2x128xf32>
    %195 = vector.shape_cast %194 : vector<1x2x128xf32> to vector<2x128xf32>
    %196 = arith.truncf %189 : vector<2x32xf32> to vector<2x32xbf16>
    %cst_69 = arith.constant dense<0.000000e+00> : vector<2x128xf32>
    %197 = tpu.matmul %196, %4, %cst_69 {dimension_numbers = #tpu.dot_dimension_numbers<[1], [0], [0], [1], [0, 0, 1, 1], [], []>} : vector<2x32xbf16>, vector<32x128xbf16>, vector<2x128xf32> -> vector<2x128xf32>
    %198 = arith.addf %195, %197 : vector<2x128xf32>
    %199 = vector.extract_strided_slice %198 {offsets = [0, 0], sizes = [2, 96], strides = [1, 1]} : vector<2x128xf32> to vector<2x96xf32>
    %200 = arith.negf %199 : vector<2x96xf32>
    %201 = math.exp %200 : vector<2x96xf32>
    %cst_70 = arith.constant 1.000000e+00 : f32
    %202 = vector.broadcast %cst_70 : f32 to vector<2x96xf32>
    %203 = arith.addf %202, %201 : vector<2x96xf32>
    %204 = arith.divf %202, %203 : vector<2x96xf32>
    %205 = vector.extract_strided_slice %204 {offsets = [0, 0], sizes = [2, 32], strides = [1, 1]} : vector<2x96xf32> to vector<2x32xf32>
    %206 = vector.extract_strided_slice %204 {offsets = [0, 32], sizes = [2, 32], strides = [1, 1]} : vector<2x96xf32> to vector<2x32xf32>
    %207 = vector.extract_strided_slice %204 {offsets = [0, 64], sizes = [2, 32], strides = [1, 1]} : vector<2x96xf32> to vector<2x32xf32>
    %208 = vector.extract_strided_slice %198 {offsets = [0, 96], sizes = [2, 32], strides = [1, 1]} : vector<2x128xf32> to vector<2x32xf32>
    %209 = math.tanh %208 : vector<2x32xf32>
    %210 = arith.mulf %206, %187 : vector<2x32xf32>
    %211 = arith.mulf %205, %209 : vector<2x32xf32>
    %212 = arith.addf %210, %211 : vector<2x32xf32>
    %213 = math.tanh %212 : vector<2x32xf32>
    %214 = arith.mulf %207, %213 : vector<2x32xf32>
    %215 = arith.truncf %214 : vector<2x32xf32> to vector<2x32xbf16>
    %c7_71 = arith.constant 7 : index
    %c0_72 = arith.constant 0 : index
    %c0_73 = arith.constant 0 : index
    %216 = vector.load %arg8[%c7_71, %c0_72, %c0_73] : memref<8x2x32xbf16, #tpu.memory_space<vmem>>, vector<1x2x32xbf16>
    %217 = vector.shape_cast %216 : vector<1x2x32xbf16> to vector<2x32xbf16>
    %218 = vector.shape_cast %215 : vector<2x32xbf16> to vector<1x2x32xbf16>
    tpu.vector_store %arg8[%c7_71, %c0_72, %c0_73], %218 {strides = array<i32>} : memref<8x2x32xbf16, #tpu.memory_space<vmem>>, vector<1x2x32xbf16>,
    %219 = math.tanh %214 : vector<2x32xf32>
    %220 = arith.truncf %219 : vector<2x32xf32> to vector<2x32xbf16>
    %c0_74 = arith.constant 0 : index
    %c0_75 = arith.constant 0 : index
    %221 = vector.load %arg5[%c0_74, %c0_75] : memref<128x128xbf16, #tpu.memory_space<vmem>>, vector<32x128xbf16>
    %cst_76 = arith.constant dense<0.000000e+00> : vector<2x128xf32>
    %222 = tpu.matmul %220, %221, %cst_76 {dimension_numbers = #tpu.dot_dimension_numbers<[1], [0], [0], [1], [0, 0, 1, 1], [], []>} : vector<2x32xbf16>, vector<32x128xbf16>, vector<2x128xf32> -> vector<2x128xf32>
    %223 = arith.addf %0, %222 : vector<2x128xf32>
    %224 = math.tanh %212 : vector<2x32xf32>
    %225 = arith.truncf %224 : vector<2x32xf32> to vector<2x32xbf16>
    %c32 = arith.constant 32 : index
    %c0_77 = arith.constant 0 : index
    %226 = vector.load %arg5[%c32, %c0_77] : memref<128x128xbf16, #tpu.memory_space<vmem>>, vector<32x128xbf16>
    %cst_78 = arith.constant dense<0.000000e+00> : vector<2x128xf32>
    %227 = tpu.matmul %225, %226, %cst_78 {dimension_numbers = #tpu.dot_dimension_numbers<[1], [0], [0], [1], [0, 0, 1, 1], [], []>} : vector<2x32xbf16>, vector<32x128xbf16>, vector<2x128xf32> -> vector<2x128xf32>
    %228 = arith.addf %223, %227 : vector<2x128xf32>
    %c1_79 = arith.constant 1 : index
    %c0_80 = arith.constant 0 : index
    %c0_81 = arith.constant 0 : index
    %229 = vector.load %arg2[%c1_79, %c0_80, %c0_81] : memref<2x32x128xbf16, #tpu.memory_space<vmem>>, vector<1x32x128xbf16>
    %230 = vector.shape_cast %229 : vector<1x32x128xbf16> to vector<32x128xbf16>
    %c1_82 = arith.constant 1 : index
    %c0_83 = arith.constant 0 : index
    %c0_84 = arith.constant 0 : index
    %231 = vector.load %arg3[%c1_82, %c0_83, %c0_84] : memref<2x32x128xbf16, #tpu.memory_space<vmem>>, vector<1x32x128xbf16>
    %232 = vector.shape_cast %231 : vector<1x32x128xbf16> to vector<32x128xbf16>
    %c1_85 = arith.constant 1 : index
    %c0_86 = arith.constant 0 : index
    %c0_87 = arith.constant 0 : index
    %233 = vector.load %arg4[%c1_85, %c0_86, %c0_87] : memref<2x1x128xf32, #tpu.memory_space<vmem>>, vector<1x1x128xf32>
    %234 = vector.shape_cast %233 : vector<1x1x128xf32> to vector<1x128xf32>
    %cst_88 = arith.constant 0.000000e+00 : f32
    %235 = vector.broadcast %cst_88 : f32 to vector<2x32xf32>
    %cst_89 = arith.constant 0.000000e+00 : f32
    %236 = vector.broadcast %cst_89 : f32 to vector<2x32xf32>
    %c0_90 = arith.constant 0 : index
    %c0_91 = arith.constant 0 : index
    %c0_92 = arith.constant 0 : index
    %237 = vector.load %arg8[%c0_90, %c0_91, %c0_92] : memref<8x2x32xbf16, #tpu.memory_space<vmem>>, vector<8x2x32xbf16>
    %238 = vector.shape_cast %237 : vector<8x2x32xbf16> to vector<16x32xbf16>
    %cst_93 = arith.constant dense<0.000000e+00> : vector<16x128xf32>
    %239 = tpu.matmul %238, %230, %cst_93 {dimension_numbers = #tpu.dot_dimension_numbers<[1], [0], [0], [1], [0, 0, 1, 1], [], []>} : vector<16x32xbf16>, vector<32x128xbf16>, vector<16x128xf32> -> vector<16x128xf32>
    %240 = vector.broadcast %234 : vector<1x128xf32> to vector<16x128xf32>
    %241 = arith.addf %239, %240 : vector<16x128xf32>
    %242 = vector.shape_cast %241 : vector<16x128xf32> to vector<8x2x128xf32>
    %c0_94 = arith.constant 0 : index
    %c0_95 = arith.constant 0 : index
    %c0_96 = arith.constant 0 : index
    %243 = vector.load %arg9[%c0_94, %c0_95, %c0_96] : memref<8x2x128xf32, #tpu.memory_space<vmem>>, vector<8x2x128xf32>
    tpu.vector_store %arg9[%c0_94, %c0_95, %c0_96], %242 {strides = array<i32>} : memref<8x2x128xf32, #tpu.memory_space<vmem>>, vector<8x2x128xf32>,
    %c0_97 = arith.constant 0 : index
    %c0_98 = arith.constant 0 : index
    %c0_99 = arith.constant 0 : index
    %244 = vector.load %arg9[%c0_97, %c0_98, %c0_99] : memref<8x2x128xf32, #tpu.memory_space<vmem>>, vector<1x2x128xf32>
    %245 = vector.shape_cast %244 : vector<1x2x128xf32> to vector<2x128xf32>
    %246 = arith.truncf %235 : vector<2x32xf32> to vector<2x32xbf16>
    %cst_100 = arith.constant dense<0.000000e+00> : vector<2x128xf32>
    %247 = tpu.matmul %246, %232, %cst_100 {dimension_numbers = #tpu.dot_dimension_numbers<[1], [0], [0], [1], [0, 0, 1, 1], [], []>} : vector<2x32xbf16>, vector<32x128xbf16>, vector<2x128xf32> -> vector<2x128xf32>
    %248 = arith.addf %245, %247 : vector<2x128xf32>
    %249 = vector.extract_strided_slice %248 {offsets = [0, 0], sizes = [2, 96], strides = [1, 1]} : vector<2x128xf32> to vector<2x96xf32>
    %250 = arith.negf %249 : vector<2x96xf32>
    %251 = math.exp %250 : vector<2x96xf32>
    %cst_101 = arith.constant 1.000000e+00 : f32
    %252 = vector.broadcast %cst_101 : f32 to vector<2x96xf32>
    %253 = arith.addf %252, %251 : vector<2x96xf32>
    %254 = arith.divf %252, %253 : vector<2x96xf32>
    %255 = vector.extract_strided_slice %254 {offsets = [0, 0], sizes = [2, 32], strides = [1, 1]} : vector<2x96xf32> to vector<2x32xf32>
    %256 = vector.extract_strided_slice %254 {offsets = [0, 32], sizes = [2, 32], strides = [1, 1]} : vector<2x96xf32> to vector<2x32xf32>
    %257 = vector.extract_strided_slice %254 {offsets = [0, 64], sizes = [2, 32], strides = [1, 1]} : vector<2x96xf32> to vector<2x32xf32>
    %258 = vector.extract_strided_slice %248 {offsets = [0, 96], sizes = [2, 32], strides = [1, 1]} : vector<2x128xf32> to vector<2x32xf32>
    %259 = math.tanh %258 : vector<2x32xf32>
    %260 = arith.mulf %256, %236 : vector<2x32xf32>
    %261 = arith.mulf %255, %259 : vector<2x32xf32>
    %262 = arith.addf %260, %261 : vector<2x32xf32>
    %263 = math.tanh %262 : vector<2x32xf32>
    %264 = arith.mulf %257, %263 : vector<2x32xf32>
    %c1_102 = arith.constant 1 : index
    %c0_103 = arith.constant 0 : index
    %c0_104 = arith.constant 0 : index
    %265 = vector.load %arg9[%c1_102, %c0_103, %c0_104] : memref<8x2x128xf32, #tpu.memory_space<vmem>>, vector<1x2x128xf32>
    %266 = vector.shape_cast %265 : vector<1x2x128xf32> to vector<2x128xf32>
    %267 = arith.truncf %264 : vector<2x32xf32> to vector<2x32xbf16>
    %cst_105 = arith.constant dense<0.000000e+00> : vector<2x128xf32>
    %268 = tpu.matmul %267, %232, %cst_105 {dimension_numbers = #tpu.dot_dimension_numbers<[1], [0], [0], [1], [0, 0, 1, 1], [], []>} : vector<2x32xbf16>, vector<32x128xbf16>, vector<2x128xf32> -> vector<2x128xf32>
    %269 = arith.addf %266, %268 : vector<2x128xf32>
    %270 = vector.extract_strided_slice %269 {offsets = [0, 0], sizes = [2, 96], strides = [1, 1]} : vector<2x128xf32> to vector<2x96xf32>
    %271 = arith.negf %270 : vector<2x96xf32>
    %272 = math.exp %271 : vector<2x96xf32>
    %cst_106 = arith.constant 1.000000e+00 : f32
    %273 = vector.broadcast %cst_106 : f32 to vector<2x96xf32>
    %274 = arith.addf %273, %272 : vector<2x96xf32>
    %275 = arith.divf %273, %274 : vector<2x96xf32>
    %276 = vector.extract_strided_slice %275 {offsets = [0, 0], sizes = [2, 32], strides = [1, 1]} : vector<2x96xf32> to vector<2x32xf32>
    %277 = vector.extract_strided_slice %275 {offsets = [0, 32], sizes = [2, 32], strides = [1, 1]} : vector<2x96xf32> to vector<2x32xf32>
    %278 = vector.extract_strided_slice %275 {offsets = [0, 64], sizes = [2, 32], strides = [1, 1]} : vector<2x96xf32> to vector<2x32xf32>
    %279 = vector.extract_strided_slice %269 {offsets = [0, 96], sizes = [2, 32], strides = [1, 1]} : vector<2x128xf32> to vector<2x32xf32>
    %280 = math.tanh %279 : vector<2x32xf32>
    %281 = arith.mulf %277, %262 : vector<2x32xf32>
    %282 = arith.mulf %276, %280 : vector<2x32xf32>
    %283 = arith.addf %281, %282 : vector<2x32xf32>
    %284 = math.tanh %283 : vector<2x32xf32>
    %285 = arith.mulf %278, %284 : vector<2x32xf32>
    %c2_107 = arith.constant 2 : index
    %c0_108 = arith.constant 0 : index
    %c0_109 = arith.constant 0 : index
    %286 = vector.load %arg9[%c2_107, %c0_108, %c0_109] : memref<8x2x128xf32, #tpu.memory_space<vmem>>, vector<1x2x128xf32>
    %287 = vector.shape_cast %286 : vector<1x2x128xf32> to vector<2x128xf32>
    %288 = arith.truncf %285 : vector<2x32xf32> to vector<2x32xbf16>
    %cst_110 = arith.constant dense<0.000000e+00> : vector<2x128xf32>
    %289 = tpu.matmul %288, %232, %cst_110 {dimension_numbers = #tpu.dot_dimension_numbers<[1], [0], [0], [1], [0, 0, 1, 1], [], []>} : vector<2x32xbf16>, vector<32x128xbf16>, vector<2x128xf32> -> vector<2x128xf32>
    %290 = arith.addf %287, %289 : vector<2x128xf32>
    %291 = vector.extract_strided_slice %290 {offsets = [0, 0], sizes = [2, 96], strides = [1, 1]} : vector<2x128xf32> to vector<2x96xf32>
    %292 = arith.negf %291 : vector<2x96xf32>
    %293 = math.exp %292 : vector<2x96xf32>
    %cst_111 = arith.constant 1.000000e+00 : f32
    %294 = vector.broadcast %cst_111 : f32 to vector<2x96xf32>
    %295 = arith.addf %294, %293 : vector<2x96xf32>
    %296 = arith.divf %294, %295 : vector<2x96xf32>
    %297 = vector.extract_strided_slice %296 {offsets = [0, 0], sizes = [2, 32], strides = [1, 1]} : vector<2x96xf32> to vector<2x32xf32>
    %298 = vector.extract_strided_slice %296 {offsets = [0, 32], sizes = [2, 32], strides = [1, 1]} : vector<2x96xf32> to vector<2x32xf32>
    %299 = vector.extract_strided_slice %296 {offsets = [0, 64], sizes = [2, 32], strides = [1, 1]} : vector<2x96xf32> to vector<2x32xf32>
    %300 = vector.extract_strided_slice %290 {offsets = [0, 96], sizes = [2, 32], strides = [1, 1]} : vector<2x128xf32> to vector<2x32xf32>
    %301 = math.tanh %300 : vector<2x32xf32>
    %302 = arith.mulf %298, %283 : vector<2x32xf32>
    %303 = arith.mulf %297, %301 : vector<2x32xf32>
    %304 = arith.addf %302, %303 : vector<2x32xf32>
    %305 = math.tanh %304 : vector<2x32xf32>
    %306 = arith.mulf %299, %305 : vector<2x32xf32>
    %c3_112 = arith.constant 3 : index
    %c0_113 = arith.constant 0 : index
    %c0_114 = arith.constant 0 : index
    %307 = vector.load %arg9[%c3_112, %c0_113, %c0_114] : memref<8x2x128xf32, #tpu.memory_space<vmem>>, vector<1x2x128xf32>
    %308 = vector.shape_cast %307 : vector<1x2x128xf32> to vector<2x128xf32>
    %309 = arith.truncf %306 : vector<2x32xf32> to vector<2x32xbf16>
    %cst_115 = arith.constant dense<0.000000e+00> : vector<2x128xf32>
    %310 = tpu.matmul %309, %232, %cst_115 {dimension_numbers = #tpu.dot_dimension_numbers<[1], [0], [0], [1], [0, 0, 1, 1], [], []>} : vector<2x32xbf16>, vector<32x128xbf16>, vector<2x128xf32> -> vector<2x128xf32>
    %311 = arith.addf %308, %310 : vector<2x128xf32>
    %312 = vector.extract_strided_slice %311 {offsets = [0, 0], sizes = [2, 96], strides = [1, 1]} : vector<2x128xf32> to vector<2x96xf32>
    %313 = arith.negf %312 : vector<2x96xf32>
    %314 = math.exp %313 : vector<2x96xf32>
    %cst_116 = arith.constant 1.000000e+00 : f32
    %315 = vector.broadcast %cst_116 : f32 to vector<2x96xf32>
    %316 = arith.addf %315, %314 : vector<2x96xf32>
    %317 = arith.divf %315, %316 : vector<2x96xf32>
    %318 = vector.extract_strided_slice %317 {offsets = [0, 0], sizes = [2, 32], strides = [1, 1]} : vector<2x96xf32> to vector<2x32xf32>
    %319 = vector.extract_strided_slice %317 {offsets = [0, 32], sizes = [2, 32], strides = [1, 1]} : vector<2x96xf32> to vector<2x32xf32>
    %320 = vector.extract_strided_slice %317 {offsets = [0, 64], sizes = [2, 32], strides = [1, 1]} : vector<2x96xf32> to vector<2x32xf32>
    %321 = vector.extract_strided_slice %311 {offsets = [0, 96], sizes = [2, 32], strides = [1, 1]} : vector<2x128xf32> to vector<2x32xf32>
    %322 = math.tanh %321 : vector<2x32xf32>
    %323 = arith.mulf %319, %304 : vector<2x32xf32>
    %324 = arith.mulf %318, %322 : vector<2x32xf32>
    %325 = arith.addf %323, %324 : vector<2x32xf32>
    %326 = math.tanh %325 : vector<2x32xf32>
    %327 = arith.mulf %320, %326 : vector<2x32xf32>
    %c4_117 = arith.constant 4 : index
    %c0_118 = arith.constant 0 : index
    %c0_119 = arith.constant 0 : index
    %328 = vector.load %arg9[%c4_117, %c0_118, %c0_119] : memref<8x2x128xf32, #tpu.memory_space<vmem>>, vector<1x2x128xf32>
    %329 = vector.shape_cast %328 : vector<1x2x128xf32> to vector<2x128xf32>
    %330 = arith.truncf %327 : vector<2x32xf32> to vector<2x32xbf16>
    %cst_120 = arith.constant dense<0.000000e+00> : vector<2x128xf32>
    %331 = tpu.matmul %330, %232, %cst_120 {dimension_numbers = #tpu.dot_dimension_numbers<[1], [0], [0], [1], [0, 0, 1, 1], [], []>} : vector<2x32xbf16>, vector<32x128xbf16>, vector<2x128xf32> -> vector<2x128xf32>
    %332 = arith.addf %329, %331 : vector<2x128xf32>
    %333 = vector.extract_strided_slice %332 {offsets = [0, 0], sizes = [2, 96], strides = [1, 1]} : vector<2x128xf32> to vector<2x96xf32>
    %334 = arith.negf %333 : vector<2x96xf32>
    %335 = math.exp %334 : vector<2x96xf32>
    %cst_121 = arith.constant 1.000000e+00 : f32
    %336 = vector.broadcast %cst_121 : f32 to vector<2x96xf32>
    %337 = arith.addf %336, %335 : vector<2x96xf32>
    %338 = arith.divf %336, %337 : vector<2x96xf32>
    %339 = vector.extract_strided_slice %338 {offsets = [0, 0], sizes = [2, 32], strides = [1, 1]} : vector<2x96xf32> to vector<2x32xf32>
    %340 = vector.extract_strided_slice %338 {offsets = [0, 32], sizes = [2, 32], strides = [1, 1]} : vector<2x96xf32> to vector<2x32xf32>
    %341 = vector.extract_strided_slice %338 {offsets = [0, 64], sizes = [2, 32], strides = [1, 1]} : vector<2x96xf32> to vector<2x32xf32>
    %342 = vector.extract_strided_slice %332 {offsets = [0, 96], sizes = [2, 32], strides = [1, 1]} : vector<2x128xf32> to vector<2x32xf32>
    %343 = math.tanh %342 : vector<2x32xf32>
    %344 = arith.mulf %340, %325 : vector<2x32xf32>
    %345 = arith.mulf %339, %343 : vector<2x32xf32>
    %346 = arith.addf %344, %345 : vector<2x32xf32>
    %347 = math.tanh %346 : vector<2x32xf32>
    %348 = arith.mulf %341, %347 : vector<2x32xf32>
    %c5_122 = arith.constant 5 : index
    %c0_123 = arith.constant 0 : index
    %c0_124 = arith.constant 0 : index
    %349 = vector.load %arg9[%c5_122, %c0_123, %c0_124] : memref<8x2x128xf32, #tpu.memory_space<vmem>>, vector<1x2x128xf32>
    %350 = vector.shape_cast %349 : vector<1x2x128xf32> to vector<2x128xf32>
    %351 = arith.truncf %348 : vector<2x32xf32> to vector<2x32xbf16>
    %cst_125 = arith.constant dense<0.000000e+00> : vector<2x128xf32>
    %352 = tpu.matmul %351, %232, %cst_125 {dimension_numbers = #tpu.dot_dimension_numbers<[1], [0], [0], [1], [0, 0, 1, 1], [], []>} : vector<2x32xbf16>, vector<32x128xbf16>, vector<2x128xf32> -> vector<2x128xf32>
    %353 = arith.addf %350, %352 : vector<2x128xf32>
    %354 = vector.extract_strided_slice %353 {offsets = [0, 0], sizes = [2, 96], strides = [1, 1]} : vector<2x128xf32> to vector<2x96xf32>
    %355 = arith.negf %354 : vector<2x96xf32>
    %356 = math.exp %355 : vector<2x96xf32>
    %cst_126 = arith.constant 1.000000e+00 : f32
    %357 = vector.broadcast %cst_126 : f32 to vector<2x96xf32>
    %358 = arith.addf %357, %356 : vector<2x96xf32>
    %359 = arith.divf %357, %358 : vector<2x96xf32>
    %360 = vector.extract_strided_slice %359 {offsets = [0, 0], sizes = [2, 32], strides = [1, 1]} : vector<2x96xf32> to vector<2x32xf32>
    %361 = vector.extract_strided_slice %359 {offsets = [0, 32], sizes = [2, 32], strides = [1, 1]} : vector<2x96xf32> to vector<2x32xf32>
    %362 = vector.extract_strided_slice %359 {offsets = [0, 64], sizes = [2, 32], strides = [1, 1]} : vector<2x96xf32> to vector<2x32xf32>
    %363 = vector.extract_strided_slice %353 {offsets = [0, 96], sizes = [2, 32], strides = [1, 1]} : vector<2x128xf32> to vector<2x32xf32>
    %364 = math.tanh %363 : vector<2x32xf32>
    %365 = arith.mulf %361, %346 : vector<2x32xf32>
    %366 = arith.mulf %360, %364 : vector<2x32xf32>
    %367 = arith.addf %365, %366 : vector<2x32xf32>
    %368 = math.tanh %367 : vector<2x32xf32>
    %369 = arith.mulf %362, %368 : vector<2x32xf32>
    %c6_127 = arith.constant 6 : index
    %c0_128 = arith.constant 0 : index
    %c0_129 = arith.constant 0 : index
    %370 = vector.load %arg9[%c6_127, %c0_128, %c0_129] : memref<8x2x128xf32, #tpu.memory_space<vmem>>, vector<1x2x128xf32>
    %371 = vector.shape_cast %370 : vector<1x2x128xf32> to vector<2x128xf32>
    %372 = arith.truncf %369 : vector<2x32xf32> to vector<2x32xbf16>
    %cst_130 = arith.constant dense<0.000000e+00> : vector<2x128xf32>
    %373 = tpu.matmul %372, %232, %cst_130 {dimension_numbers = #tpu.dot_dimension_numbers<[1], [0], [0], [1], [0, 0, 1, 1], [], []>} : vector<2x32xbf16>, vector<32x128xbf16>, vector<2x128xf32> -> vector<2x128xf32>
    %374 = arith.addf %371, %373 : vector<2x128xf32>
    %375 = vector.extract_strided_slice %374 {offsets = [0, 0], sizes = [2, 96], strides = [1, 1]} : vector<2x128xf32> to vector<2x96xf32>
    %376 = arith.negf %375 : vector<2x96xf32>
    %377 = math.exp %376 : vector<2x96xf32>
    %cst_131 = arith.constant 1.000000e+00 : f32
    %378 = vector.broadcast %cst_131 : f32 to vector<2x96xf32>
    %379 = arith.addf %378, %377 : vector<2x96xf32>
    %380 = arith.divf %378, %379 : vector<2x96xf32>
    %381 = vector.extract_strided_slice %380 {offsets = [0, 0], sizes = [2, 32], strides = [1, 1]} : vector<2x96xf32> to vector<2x32xf32>
    %382 = vector.extract_strided_slice %380 {offsets = [0, 32], sizes = [2, 32], strides = [1, 1]} : vector<2x96xf32> to vector<2x32xf32>
    %383 = vector.extract_strided_slice %380 {offsets = [0, 64], sizes = [2, 32], strides = [1, 1]} : vector<2x96xf32> to vector<2x32xf32>
    %384 = vector.extract_strided_slice %374 {offsets = [0, 96], sizes = [2, 32], strides = [1, 1]} : vector<2x128xf32> to vector<2x32xf32>
    %385 = math.tanh %384 : vector<2x32xf32>
    %386 = arith.mulf %382, %367 : vector<2x32xf32>
    %387 = arith.mulf %381, %385 : vector<2x32xf32>
    %388 = arith.addf %386, %387 : vector<2x32xf32>
    %389 = math.tanh %388 : vector<2x32xf32>
    %390 = arith.mulf %383, %389 : vector<2x32xf32>
    %c7_132 = arith.constant 7 : index
    %c0_133 = arith.constant 0 : index
    %c0_134 = arith.constant 0 : index
    %391 = vector.load %arg9[%c7_132, %c0_133, %c0_134] : memref<8x2x128xf32, #tpu.memory_space<vmem>>, vector<1x2x128xf32>
    %392 = vector.shape_cast %391 : vector<1x2x128xf32> to vector<2x128xf32>
    %393 = arith.truncf %390 : vector<2x32xf32> to vector<2x32xbf16>
    %cst_135 = arith.constant dense<0.000000e+00> : vector<2x128xf32>
    %394 = tpu.matmul %393, %232, %cst_135 {dimension_numbers = #tpu.dot_dimension_numbers<[1], [0], [0], [1], [0, 0, 1, 1], [], []>} : vector<2x32xbf16>, vector<32x128xbf16>, vector<2x128xf32> -> vector<2x128xf32>
    %395 = arith.addf %392, %394 : vector<2x128xf32>
    %396 = vector.extract_strided_slice %395 {offsets = [0, 0], sizes = [2, 96], strides = [1, 1]} : vector<2x128xf32> to vector<2x96xf32>
    %397 = arith.negf %396 : vector<2x96xf32>
    %398 = math.exp %397 : vector<2x96xf32>
    %cst_136 = arith.constant 1.000000e+00 : f32
    %399 = vector.broadcast %cst_136 : f32 to vector<2x96xf32>
    %400 = arith.addf %399, %398 : vector<2x96xf32>
    %401 = arith.divf %399, %400 : vector<2x96xf32>
    %402 = vector.extract_strided_slice %401 {offsets = [0, 0], sizes = [2, 32], strides = [1, 1]} : vector<2x96xf32> to vector<2x32xf32>
    %403 = vector.extract_strided_slice %401 {offsets = [0, 32], sizes = [2, 32], strides = [1, 1]} : vector<2x96xf32> to vector<2x32xf32>
    %404 = vector.extract_strided_slice %401 {offsets = [0, 64], sizes = [2, 32], strides = [1, 1]} : vector<2x96xf32> to vector<2x32xf32>
    %405 = vector.extract_strided_slice %395 {offsets = [0, 96], sizes = [2, 32], strides = [1, 1]} : vector<2x128xf32> to vector<2x32xf32>
    %406 = math.tanh %405 : vector<2x32xf32>
    %407 = arith.mulf %403, %388 : vector<2x32xf32>
    %408 = arith.mulf %402, %406 : vector<2x32xf32>
    %409 = arith.addf %407, %408 : vector<2x32xf32>
    %410 = math.tanh %409 : vector<2x32xf32>
    %411 = arith.mulf %404, %410 : vector<2x32xf32>
    %412 = math.tanh %411 : vector<2x32xf32>
    %413 = arith.truncf %412 : vector<2x32xf32> to vector<2x32xbf16>
    %c64 = arith.constant 64 : index
    %c0_137 = arith.constant 0 : index
    %414 = vector.load %arg5[%c64, %c0_137] : memref<128x128xbf16, #tpu.memory_space<vmem>>, vector<32x128xbf16>
    %cst_138 = arith.constant dense<0.000000e+00> : vector<2x128xf32>
    %415 = tpu.matmul %413, %414, %cst_138 {dimension_numbers = #tpu.dot_dimension_numbers<[1], [0], [0], [1], [0, 0, 1, 1], [], []>} : vector<2x32xbf16>, vector<32x128xbf16>, vector<2x128xf32> -> vector<2x128xf32>
    %416 = arith.addf %228, %415 : vector<2x128xf32>
    %417 = math.tanh %409 : vector<2x32xf32>
    %418 = arith.truncf %417 : vector<2x32xf32> to vector<2x32xbf16>
    %c96 = arith.constant 96 : index
    %c0_139 = arith.constant 0 : index
    %419 = vector.load %arg5[%c96, %c0_139] : memref<128x128xbf16, #tpu.memory_space<vmem>>, vector<32x128xbf16>
    %cst_140 = arith.constant dense<0.000000e+00> : vector<2x128xf32>
    %420 = tpu.matmul %418, %419, %cst_140 {dimension_numbers = #tpu.dot_dimension_numbers<[1], [0], [0], [1], [0, 0, 1, 1], [], []>} : vector<2x32xbf16>, vector<32x128xbf16>, vector<2x128xf32> -> vector<2x128xf32>
    %421 = arith.addf %416, %420 : vector<2x128xf32>
    %c0_141 = arith.constant 0 : index
    %c0_142 = arith.constant 0 : index
    %422 = vector.load %arg6[%c0_141, %c0_142] : memref<1x128xf32, #tpu.memory_space<vmem>>, vector<1x128xf32>
    %423 = vector.broadcast %422 : vector<1x128xf32> to vector<2x128xf32>
    %424 = arith.addf %421, %423 : vector<2x128xf32>
    %c0_143 = arith.constant 0 : index
    %c0_144 = arith.constant 0 : index
    %425 = vector.load %arg7[%c0_143, %c0_144] : memref<2x128xf32, #tpu.memory_space<vmem>>, vector<2x128xf32>
    tpu.vector_store %arg7[%c0_143, %c0_144], %424 {strides = array<i32>} : memref<2x128xf32, #tpu.memory_space<vmem>>, vector<2x128xf32>,
    return
  }
  func.func @transform_0(%arg0: i32) -> (i32, i32, i32) {
    %c0_i32 = arith.constant 0 : i32
    %c0_i32_0 = arith.constant 0 : i32
    %c0_i32_1 = arith.constant 0 : i32
    return %c0_i32, %arg0, %c0_i32_0 : i32, i32, i32
  }
  func.func @transform_1(%arg0: i32) -> (i32, i32, i32) {
    %c0_i32 = arith.constant 0 : i32
    %c0_i32_0 = arith.constant 0 : i32
    %c0_i32_1 = arith.constant 0 : i32
    %c0_i32_2 = arith.constant 0 : i32
    return %c0_i32, %c0_i32_0, %c0_i32_1 : i32, i32, i32
  }
  func.func @transform_2(%arg0: i32) -> (i32, i32, i32) {
    %c0_i32 = arith.constant 0 : i32
    %c0_i32_0 = arith.constant 0 : i32
    %c0_i32_1 = arith.constant 0 : i32
    %c0_i32_2 = arith.constant 0 : i32
    return %c0_i32, %c0_i32_0, %c0_i32_1 : i32, i32, i32
  }
  func.func @transform_3(%arg0: i32) -> (i32, i32, i32) {
    %c0_i32 = arith.constant 0 : i32
    %c0_i32_0 = arith.constant 0 : i32
    %c0_i32_1 = arith.constant 0 : i32
    %c0_i32_2 = arith.constant 0 : i32
    return %c0_i32, %c0_i32_0, %c0_i32_1 : i32, i32, i32
  }
  func.func @transform_4(%arg0: i32) -> (i32, i32) {
    %c0_i32 = arith.constant 0 : i32
    %c0_i32_0 = arith.constant 0 : i32
    %c0_i32_1 = arith.constant 0 : i32
    return %c0_i32, %c0_i32_0 : i32, i32
  }
  func.func @transform_5(%arg0: i32) -> (i32, i32) {
    %c0_i32 = arith.constant 0 : i32
    %c0_i32_0 = arith.constant 0 : i32
    %c0_i32_1 = arith.constant 0 : i32
    return %c0_i32, %c0_i32_0 : i32, i32
  }
  func.func @transform_6(%arg0: i32) -> (i32, i32) {
    %c0_i32 = arith.constant 0 : i32
    %c0_i32_0 = arith.constant 0 : i32
    return %arg0, %c0_i32 : i32, i32
  }
}

</mosaic_0001>

<llo_original>
// kernel: tpu_custom_call.1
$region0: #{tpu_custom_call.1}
  #allocation0 [shape = 'u32[]', space=smem, size = 0x4, offset = 0x4, fixed_abs, tag = 'smem constant byte address 0x4 - core index']
  #allocation1 [shape = 'u32[144,128]{1,0:T(1,128)}', space=vmem, size = 0x12000, scoped, tag = 'internal scratch']
  #allocation2 [shape = 'bf16[8,2,32]{2,1,0:T(2,128)(2,1)}', space=vmem, size = 0x1000, scoped, tag = 'scratch operand']
  #allocation3 [shape = 'f32[8,2,128]{2,1,0:T(2,128)}', space=vmem, size = 0x2000, scoped, tag = 'scratch operand']
  %s0 = inlined_call_operand.hbm [shape: bf16[8,2,32], index: 0, kind: input, shape index: {}]
  %s1 = inlined_call_operand.hbm [shape: bf16[2,32,128], index: 1, kind: input, shape index: {}]
  %s2 = inlined_call_operand.hbm [shape: bf16[2,32,128], index: 2, kind: input, shape index: {}]
  %s3 = inlined_call_operand.vmem [shape: f32[2,1,128], index: 3, kind: input, shape index: {}]
  %s4 = inlined_call_operand.hbm [shape: bf16[128,128], index: 4, kind: input, shape index: {}]
  %s5 = inlined_call_operand.vmem [shape: f32[1,128], index: 5, kind: input, shape index: {}]
  %s6 = inlined_call_operand.hbm [shape: f32[2,128], index: 6, kind: output, shape index: {}]
  %s7 = sld [smem:[#allocation0]]
  $region50: #{tpu_custom_call.1} parent=0
    _
  %s9 = ssub.s32 1, %s7
  %s10 = scalar_select 0, %s9, %s7
  $region1: #{tpu_custom_call.1} parent=0
    #allocation4 [shape = 'u8[4096]{0}', space=vmem, size = 0x1000, scoped, tag = 'input window, operand 0, single buffered']
    #allocation5 [shape = 's32[1]{0}', space=sflag, size = 0x4, scoped, tag = 'scoped memory for tpu_custom_call.1']
    #allocation6 [shape = 's32[1]{0}', space=sflag, size = 0x4, scoped, tag = 'scoped memory for tpu_custom_call.1']
    #allocation7 [shape = 'u8[16384]{0}', space=vmem, size = 0x4000, scoped, tag = 'input window, operand 1, single buffered']
    #allocation8 [shape = 's32[1]{0}', space=sflag, size = 0x4, scoped, tag = 'scoped memory for tpu_custom_call.1']
    #allocation9 [shape = 'u8[16384]{0}', space=vmem, size = 0x4000, scoped, tag = 'input window, operand 2, single buffered']
    #allocation10 [shape = 'u8[32768]{0}', space=vmem, size = 0x8000, scoped, tag = 'input window, operand 4, single buffered']
    #allocation11 [shape = 's32[1]{0}', space=sflag, size = 0x4, scoped, tag = 'scoped memory for tpu_custom_call.1']
    #allocation12 [shape = 'u8[1024]{0}', space=vmem, size = 0x400, scoped, tag = 'output window, operand 0, single buffered']
    %11 = vsyncpa [#allocation5], 0
    %12 = vsyncpa [#allocation8], 0
    %13 = vsyncpa [#allocation11], 0
    %14 = vsyncpa [#allocation6], 0
    // Predicated region
    $region2: #{tpu_custom_call.1} parent=1 // pred_check
      _
    $region3: #{tpu_custom_call.1} parent=1 // pred_check_branch
      %16 = sbr.rel (0) target = $region5
    $region4: #{tpu_custom_call.1} parent=1 // pred_region
      %s18 = ssub.s32 128, 128
      %19 = vsyncadd [#allocation5], %s18
      %s20 = sshll.u32 [#allocation4], 4
      %s21 = int_to_ptr.vmem [resolvable:$true] %s20
      %26 = dma.hbm_to_vmem [thread:$0]  %s0, 128, %s21, [#allocation5], 16, 16, 1
    $region5: #{tpu_custom_call.1} parent=1 // pred_fallthru
      _
    // Predicated region
    $region6: #{tpu_custom_call.1} parent=1 // pred_check
      _
    $region7: #{tpu_custom_call.1} parent=1 // pred_check_branch
      %28 = sbr.rel (0) target = $region9
    $region8: #{tpu_custom_call.1} parent=1 // pred_region
      %s30 = ssub.s32 512, 512
      %31 = vsyncadd [#allocation8], %s30
      %s32 = sshll.u32 [#allocation7], 4
      %s33 = int_to_ptr.vmem [resolvable:$true] %s32
      %38 = dma.hbm_to_vmem [thread:$0]  %s1, 512, %s33, [#allocation8], 64, 64, 4
    $region9: #{tpu_custom_call.1} parent=1 // pred_fallthru
      _
    // Predicated region
    $region10: #{tpu_custom_call.1} parent=1 // pred_check
      _
    $region11: #{tpu_custom_call.1} parent=1 // pred_check_branch
      %40 = sbr.rel (0) target = $region13
    $region12: #{tpu_custom_call.1} parent=1 // pred_region
      %s42 = ssub.s32 512, 512
      %43 = vsyncadd [#allocation8], %s42
      %s44 = sshll.u32 [#allocation9], 4
      %s45 = int_to_ptr.vmem [resolvable:$true] %s44
      %50 = dma.hbm_to_vmem [thread:$0]  %s2, 512, %s45, [#allocation8], 64, 64, 4
    $region13: #{tpu_custom_call.1} parent=1 // pred_fallthru
      _
    // Predicated region
    $region14: #{tpu_custom_call.1} parent=1 // pred_check
      _
    $region15: #{tpu_custom_call.1} parent=1 // pred_check_branch
      %52 = sbr.rel (0) target = $region17
    $region16: #{tpu_custom_call.1} parent=1 // pred_region
      _
    $region17: #{tpu_custom_call.1} parent=1 // pred_fallthru
      _
    // Predicated region
    $region18: #{tpu_custom_call.1} parent=1 // pred_check
      _
    $region19: #{tpu_custom_call.1} parent=1 // pred_check_branch
      %54 = sbr.rel (0) target = $region21
    $region20: #{tpu_custom_call.1} parent=1 // pred_region
      %s56 = ssub.s32 1024, 1024
      %57 = vsyncadd [#allocation11], %s56
      %s58 = sshll.u32 [#allocation10], 4
      %s59 = int_to_ptr.vmem [resolvable:$true] %s58
      %64 = dma.hbm_to_vmem [thread:$0]  %s4, 1024, %s59, [#allocation11], 64, 64, 4
    $region21: #{tpu_custom_call.1} parent=1 // pred_fallthru
      _
    // Predicated region
    $region22: #{tpu_custom_call.1} parent=1 // pred_check
      _
    $region23: #{tpu_custom_call.1} parent=1 // pred_check_branch
      %66 = sbr.rel (0) target = $region25
    $region24: #{tpu_custom_call.1} parent=1 // pred_region
      _
    $region25: #{tpu_custom_call.1} parent=1 // pred_fallthru
      _
    // Predicated region
    $region26: #{tpu_custom_call.1} parent=1 // pred_check
      _
    $region27: #{tpu_custom_call.1} parent=1 // pred_check_branch
      %68 = sbr.rel (0) target = $region29
    $region28: #{tpu_custom_call.1} parent=1 // pred_region
      %69 = dma.done [#allocation5], 128
    $region29: #{tpu_custom_call.1} parent=1 // pred_fallthru
      _
    // Predicated region
    $region30: #{tpu_custom_call.1} parent=1 // pred_check
      _
    $region31: #{tpu_custom_call.1} parent=1 // pred_check_branch
      %71 = sbr.rel (0) target = $region33
    $region32: #{tpu_custom_call.1} parent=1 // pred_region
      %72 = dma.done [#allocation8], 512
    $region33: #{tpu_custom_call.1} parent=1 // pred_fallthru
      _
    // Predicated region
    $region34: #{tpu_custom_call.1} parent=1 // pred_check
      _
    $region35: #{tpu_custom_call.1} parent=1 // pred_check_branch
      %74 = sbr.rel (0) target = $region37
    $region36: #{tpu_custom_call.1} parent=1 // pred_region
      %75 = dma.done [#allocation8], 512
    $region37: #{tpu_custom_call.1} parent=1 // pred_fallthru
      _
    // Predicated region
    $region38: #{tpu_custom_call.1} parent=1 // pred_check
      _
    $region39: #{tpu_custom_call.1} parent=1 // pred_check_branch
      %77 = sbr.rel (0) target = $region41
    $region40: #{tpu_custom_call.1} parent=1 // pred_region
      %78 = dma.done [#allocation11], 1024
    $region41: #{tpu_custom_call.1} parent=1 // pred_fallthru
      _
    %v80 = vld [vmem:[#allocation7] sm:$0xf]
    %v81 = vld [vmem:[#allocation7 + $0x4] sm:$0xf]
    %v82 = vld [vmem:[#allocation7 + $0x8] sm:$0xf]
    %v83 = vld [vmem:[#allocation7 + $0xc] sm:$0xf]
    %v84 = vld [vmem:[#allocation9] sm:$0xf]
    %v85 = vld [vmem:[#allocation9 + $0x4] sm:$0xf]
    %v86 = vld [vmem:[#allocation9 + $0x8] sm:$0xf]
    %v87 = vld [vmem:[#allocation9 + $0xc] sm:$0xf]
    %v88 = vld [vmem:[%s3] sm:$0x1]
    %v89 = vld [vmem:[#allocation4] sm:$0x1]
    %v90 = vld [vmem:[#allocation4 + $0x1] sm:$0x1]
    %v91 = vld [vmem:[#allocation4 + $0x2] sm:$0x1]
    %v92 = vld [vmem:[#allocation4 + $0x3] sm:$0x1]
    %v93 = vld [vmem:[#allocation4 + $0x4] sm:$0x1]
    %v94 = vld [vmem:[#allocation4 + $0x5] sm:$0x1]
    %v95 = vld [vmem:[#allocation4 + $0x6] sm:$0x1]
    %v96 = vld [vmem:[#allocation4 + $0x7] sm:$0x1]
    %v97 = vunpack.c.l.bf16 %v89
    %v98 = vunpack.c.l.bf16 %v90
    %v99 = vunpack.c.l.bf16 %v91
    %v100 = vunpack.c.l.bf16 %v92
    %v101 = vunpack.c.l.bf16 %v93
    %v102 = vunpack.c.l.bf16 %v94
    %v103 = vunpack.c.l.bf16 %v95
    %v104 = vunpack.c.l.bf16 %v96
    %v105 = vtanh.pop %v97
    %v106 = vtanh.pop %v98
    %v107 = vtanh.pop %v99
    %v108 = vtanh.pop %v100
    %v109 = vtanh.pop %v101
    %v110 = vtanh.pop %v102
    %v111 = vtanh.pop %v103
    %v112 = vtanh.pop %v104
    %v113 = vpack.c.bf16 %v105, %v105
    %v114 = vpack.c.bf16 %v106, %v106
    %v115 = vpack.c.bf16 %v107, %v107
    %v116 = vpack.c.bf16 %v108, %v108
    %v117 = vpack.c.bf16 %v109, %v109
    %v118 = vpack.c.bf16 %v110, %v110
    %v119 = vpack.c.bf16 %v111, %v111
    %v120 = vpack.c.bf16 %v112, %v112
    %v122 = vlaneseq
    %v123 = vshrl.u32 %v122, 7
    %v124 = vsub.s32 0, %v123
    %v125 = vrot.slane %v88, %v124
    %v135 = vcombine.low %v113, %v114
    %v136 = vcombine.low %v115, %v116
    %v137 = vcombine.low %v117, %v118
    %v138 = vcombine.low %v119, %v120
    %v140 = vunpack.c.l.s4 1966171168
    %v141 = vunpack.c.0.s8 %v140
    %v142 = vlaneseq
    %v143 = vshrl.u32 %v142, 7
    %v144 = vsub.s32 %v141, %v143
    %v145 = vrot.slane %v135, %v144
    %v147 = vunpack.c.l.s4 1966171168
    %v148 = vunpack.c.0.s8 %v147
    %v149 = vlaneseq
    %v150 = vshrl.u32 %v149, 7
    %v151 = vsub.s32 %v148, %v150
    %v152 = vrot.slane %v136, %v151
    %v154 = vunpack.c.l.s4 1966171168
    %v155 = vunpack.c.0.s8 %v154
    %v156 = vlaneseq
    %v157 = vshrl.u32 %v156, 7
    %v158 = vsub.s32 %v155, %v157
    %v159 = vrot.slane %v137, %v158
    %v161 = vunpack.c.l.s4 1966171168
    %v162 = vunpack.c.0.s8 %v161
    %v163 = vlaneseq
    %v164 = vshrl.u32 %v163, 7
    %v165 = vsub.s32 %v162, %v164
    %v166 = vrot.slane %v138, %v165
    %v167 = vcombine.low %v145, %v152
    %v168 = vcombine.low %v159, %v166
    %v170 = vunpack.c.l.s4 1966171168
    %v171 = vunpack.c.0.s8 %v170
    %v172 = vlaneseq
    %v173 = vshrl.u32 %v172, 7
    %v174 = vsub.s32 %v171, %v173
    %v175 = vrot.slane %v167, %v174
    %v177 = vunpack.c.l.s4 1966171168
    %v178 = vunpack.c.0.s8 %v177
    %v179 = vlaneseq
    %v180 = vshrl.u32 %v179, 7
    %v181 = vsub.s32 %v178, %v180
    %v182 = vrot.slane %v168, %v181
    %v183 = vcombine.low %v175, %v182
    %v188 = vunpack.c.l.b16 %v80
    %v189 = vunpack.c.l.b16 %v81
    %v190 = vunpack.c.l.b16 %v82
    %v191 = vunpack.c.l.b16 %v83
    %v192 = vpack.c.b16 %v189, %v188
    %v193 = vpack.c.b16 %v191, %v190
    %vm196 = vcmask 261120
    %v198 = vsel %vm196, %v183, 0
    %200 = vmatprep.subr.bf16.mxu0 0
    %201 = vmatpush1.bf16.msra.mxu0 0
    %202 = vmatprep.subr.bf16.mxu0 0
    %203 = vmatpush1.bf16.msra.mxu0 0
    %204 = vmatprep.subr.bf16.mxu0 0
    %205 = vmatpush1.bf16.msra.mxu0 0
    %206 = vmatprep.subr.bf16.mxu0 0
    %207 = vmatpush1.bf16.msra.mxu0 0
    %208 = vmatprep.subr.bf16.mxu0 0
    %209 = vmatpush1.bf16.msra.mxu0 0
    %210 = vmatprep.subr.bf16.mxu0 0
    %211 = vmatpush1.bf16.msra.mxu0 0
    %212 = vmatprep.subr.bf16.mxu0 0
    %213 = vmatpush1.bf16.msra.mxu0 %v193
    %214 = vmatprep.subr.bf16.mxu0 0
    %215 = vmatpush1.bf16.msra.mxu0 %v192
    %216 = vmatprep.subr.bf16.mxu0 0
    %217 = vmatpush2.bf16.msra.mxu0 0
    %218 = vmatprep.subr.bf16.mxu0 0
    %219 = vmatpush2.bf16.msra.mxu0 0
    %220 = vmatprep.subr.bf16.mxu0 0
    %221 = vmatpush2.bf16.msra.mxu0 0
    %222 = vmatprep.subr.bf16.mxu0 0
    %223 = vmatpush2.bf16.msra.mxu0 0
    %224 = vmatprep.subr.bf16.mxu0 0
    %225 = vmatpush2.bf16.msra.mxu0 0
    %226 = vmatprep.subr.bf16.mxu0 0
    %227 = vmatpush2.bf16.msra.mxu0 0
    %228 = vmatprep.subr.bf16.mxu0 0
    %229 = vmatpush2.bf16.msra.mxu0 0
    %230 = vmatprep.subr.bf16.mxu0 0
    %231 = vmatpush2.bf16.msra.mxu0 0
    %232 = vmatprep.mubr.bf16.mxu0 0
    %233 = vmatmul.mubr.bf16.gmra.mxu0 %v198
    %v234 = vpop.f32.mrf.mxu0
    %v235 = vadd.f32 %v125, %v234
    %v236 = vpop.f32.mrf.mxu0
    %v237 = vpop.f32.mrf.mxu0
    %v238 = vadd.f32 %v125, %v237
    %v239 = vpop.f32.mrf.mxu0
    %240 = vdwg.mxu0
    %v243 = vcombine.high %v235, %v235
    %v245 = vunpack.c.l.s4 1983009808
    %v246 = vunpack.c.0.s8 %v245
    %v247 = vlaneseq
    %v248 = vshrl.u32 %v247, 7
    %v249 = vsub.s32 %v246, %v248
    %v250 = vrot.slane %v235, %v249
    %v252 = vunpack.c.l.s4 1983009808
    %v253 = vunpack.c.0.s8 %v252
    %v254 = vlaneseq
    %v255 = vshrl.u32 %v254, 7
    %v256 = vsub.s32 %v253, %v255
    %v257 = vrot.slane %v243, %v256
    %v258 = vcombine.high %v250, %v250
    %v259 = vcombine.high %v257, %v257
    %v260 = vcombine.high %v238, %v238
    %v262 = vunpack.c.l.s4 1983009808
    %v263 = vunpack.c.0.s8 %v262
    %v264 = vlaneseq
    %v265 = vshrl.u32 %v264, 7
    %v266 = vsub.s32 %v263, %v265
    %v267 = vrot.slane %v238, %v266
    %v269 = vunpack.c.l.s4 1983009808
    %v270 = vunpack.c.0.s8 %v269
    %v271 = vlaneseq
    %v272 = vshrl.u32 %v271, 7
    %v273 = vsub.s32 %v270, %v272
    %v274 = vrot.slane %v260, %v273
    %v275 = vcombine.high %v267, %v267
    %v276 = vcombine.high %v274, %v274
    %285 = vst [vmem:[#allocation3] sm:$0x3] %v250
    %286 = vst [vmem:[#allocation3 + $0x2] sm:$0x3] %v258
    %287 = vst [vmem:[#allocation3 + $0x4] sm:$0x3] %v257
    %288 = vst [vmem:[#allocation3 + $0x6] sm:$0x3] %v259
    %289 = vst [vmem:[#allocation3 + $0x8] sm:$0x3] %v267
    %290 = vst [vmem:[#allocation3 + $0xa] sm:$0x3] %v275
    %291 = vst [vmem:[#allocation3 + $0xc] sm:$0x3] %v274
    %292 = vst [vmem:[#allocation3 + $0xe] sm:$0x3] %v276
    %v293 = vld [vmem:[#allocation3] sm:$0x3]
    %v298 = vunpack.c.l.b16 %v84
    %v299 = vunpack.c.l.b16 %v85
    %v300 = vunpack.c.l.b16 %v86
    %v301 = vunpack.c.l.b16 %v87
    %v302 = vpack.c.b16 %v299, %v298
    %v303 = vpack.c.b16 %v301, %v300
    %v307 = vsel %vm196, 0, 0
    %309 = vmatprep.subr.bf16.mxu0 0
    %310 = vmatpush1.bf16.msra.mxu0 0
    %311 = vmatprep.subr.bf16.mxu0 0
    %312 = vmatpush1.bf16.msra.mxu0 0
    %313 = vmatprep.subr.bf16.mxu0 0
    %314 = vmatpush1.bf16.msra.mxu0 0
    %315 = vmatprep.subr.bf16.mxu0 0
    %316 = vmatpush1.bf16.msra.mxu0 0
    %317 = vmatprep.subr.bf16.mxu0 0
    %318 = vmatpush1.bf16.msra.mxu0 0
    %319 = vmatprep.subr.bf16.mxu0 0
    %320 = vmatpush1.bf16.msra.mxu0 0
    %321 = vmatprep.subr.bf16.mxu0 0
    %322 = vmatpush1.bf16.msra.mxu0 %v303
    %323 = vmatprep.subr.bf16.mxu0 0
    %324 = vmatpush1.bf16.msra.mxu0 %v302
    %325 = vmatprep.subr.bf16.mxu0 0
    %326 = vmatpush2.bf16.msra.mxu0 0
    %327 = vmatprep.subr.bf16.mxu0 0
    %328 = vmatpush2.bf16.msra.mxu0 0
    %329 = vmatprep.subr.bf16.mxu0 0
    %330 = vmatpush2.bf16.msra.mxu0 0
    %331 = vmatprep.subr.bf16.mxu0 0
    %332 = vmatpush2.bf16.msra.mxu0 0
    %333 = vmatprep.subr.bf16.mxu0 0
    %334 = vmatpush2.bf16.msra.mxu0 0
    %335 = vmatprep.subr.bf16.mxu0 0
    %336 = vmatpush2.bf16.msra.mxu0 0
    %337 = vmatprep.subr.bf16.mxu0 0
    %338 = vmatpush2.bf16.msra.mxu0 0
    %339 = vmatprep.subr.bf16.mxu0 0
    %340 = vmatpush2.bf16.msra.mxu0 0
    %341 = vmatprep.mubr.bf16.mxu0 0
    %342 = vmatmul.mubr.bf16.gmra.mxu0 %v307
    %v343 = vpop.f32.mrf.mxu0
    %v344 = vadd.f32 0.0, %v343
    %v345 = vpop.f32.mrf.mxu0
    %v346 = vpop.f32.mrf.mxu0
    %v347 = vpop.f32.mrf.mxu0
    %348 = vdwg.mxu0
    %v349 = vadd.f32 %v293, %v344
    %v350 = vxor.u32 %v349, 2147483648
    %v351 = vmul.f32 %v350, 1.442695
    %v352 = vpow.pop %v351
    %v353 = vadd.f32 %v352, 1.0
    %v354 = vrcp.pop %v353
    %v355 = vmul.f32 1.0, %v354
    %v356 = vtanh.pop %v349
    %v357 = vmul.f32 %v355, 0.0
    %359 = vrot.lane.b32.xlu0 %v356, 32
    %v360 = vpop.permute.xlu0 %359
    %v362 = vmul.f32 %v355, %v360
    %364 = vrot.lane.b32.xlu0 %v362, 32
    %v365 = vpop.permute.xlu0 %364
    %v367 = vadd.f32 %v357, %v365
    %v368 = vtanh.pop %v367
    %370 = vrot.lane.b32.xlu0 %v368, 32
    %v371 = vpop.permute.xlu0 %370
    %v373 = vmul.f32 %v355, %v371
    %v374 = vpack.c.bf16 %v373, %v373
    %v377 = vunpack.c.l.s4 1966171168
    %v378 = vunpack.c.0.s8 %v377
    %v379 = vlaneseq
    %v380 = vshrl.u32 %v379, 7
    %v381 = vsub.s32 %v378, %v380
    %v382 = vrot.slane %v374, %v381
    %v384 = vunpack.c.l.s4 1966171168
    %v385 = vunpack.c.0.s8 %v384
    %v386 = vlaneseq
    %v387 = vshrl.u32 %v386, 7
    %v388 = vsub.s32 %v385, %v387
    %v389 = vrot.slane %v382, %v388
    %390 = vrot.lane.b32.xlu0 %v389, 64
    %v391 = vpop.permute.xlu0 %390
    %vm393 = vcmask 253952
    %394 = vst.msk [vmem:[#allocation2] sm:$0x1] %vm393, %v391
    %s395 = scalar_lea.vmem [#allocation3], 2
    %v396 = vld [vmem:[%s395] sm:$0x3]
    %397 = vrot.lane.b32.xlu0 %v374, 64
    %v398 = vpop.permute.xlu0 %397
    %v400 = vsel %vm196, %v398, 0
    %402 = vmatprep.subr.bf16.mxu0 0
    %403 = vmatpush1.bf16.msra.mxu0 0
    %404 = vmatprep.subr.bf16.mxu0 0
    %405 = vmatpush1.bf16.msra.mxu0 0
    %406 = vmatprep.subr.bf16.mxu0 0
    %407 = vmatpush1.bf16.msra.mxu0 0
    %408 = vmatprep.subr.bf16.mxu0 0
    %409 = vmatpush1.bf16.msra.mxu0 0
    %410 = vmatprep.subr.bf16.mxu0 0
    %411 = vmatpush1.bf16.msra.mxu0 0
    %412 = vmatprep.subr.bf16.mxu0 0
    %413 = vmatpush1.bf16.msra.mxu0 0
    %414 = vmatprep.subr.bf16.mxu0 0
    %415 = vmatpush1.bf16.msra.mxu0 %v303
    %416 = vmatprep.subr.bf16.mxu0 0
    %417 = vmatpush1.bf16.msra.mxu0 %v302
    %418 = vmatprep.subr.bf16.mxu0 0
    %419 = vmatpush2.bf16.msra.mxu0 0
    %420 = vmatprep.subr.bf16.mxu0 0
    %421 = vmatpush2.bf16.msra.mxu0 0
    %422 = vmatprep.subr.bf16.mxu0 0
    %423 = vmatpush2.bf16.msra.mxu0 0
    %424 = vmatprep.subr.bf16.mxu0 0
    %425 = vmatpush2.bf16.msra.mxu0 0
    %426 = vmatprep.subr.bf16.mxu0 0
    %427 = vmatpush2.bf16.msra.mxu0 0
    %428 = vmatprep.subr.bf16.mxu0 0
    %429 = vmatpush2.bf16.msra.mxu0 0
    %430 = vmatprep.subr.bf16.mxu0 0
    %431 = vmatpush2.bf16.msra.mxu0 0
    %432 = vmatprep.subr.bf16.mxu0 0
    %433 = vmatpush2.bf16.msra.mxu0 0
    %434 = vmatprep.mubr.bf16.mxu0 0
    %435 = vmatmul.mubr.bf16.gmra.mxu0 %v400
    %v436 = vpop.f32.mrf.mxu0
    %v437 = vadd.f32 0.0, %v436
    %v438 = vpop.f32.mrf.mxu0
    %v439 = vpop.f32.mrf.mxu0
    %v440 = vpop.f32.mrf.mxu0
    %441 = vdwg.mxu0
    %v442 = vadd.f32 %v396, %v437
    %v443 = vxor.u32 %v442, 2147483648
    %v444 = vmul.f32 %v443, 1.442695
    %v445 = vpow.pop %v444
    %v446 = vadd.f32 %v445, 1.0
    %v447 = vrcp.pop %v446
    %v448 = vmul.f32 1.0, %v447
    %v449 = vtanh.pop %v442
    %v450 = vmul.f32 %v448, %v367
    %452 = vrot.lane.b32.xlu0 %v449, 32
    %v453 = vpop.permute.xlu0 %452
    %v455 = vmul.f32 %v448, %v453
    %457 = vrot.lane.b32.xlu0 %v455, 32
    %v458 = vpop.permute.xlu0 %457
    %v460 = vadd.f32 %v450, %v458
    %v461 = vtanh.pop %v460
    %463 = vrot.lane.b32.xlu0 %v461, 32
    %v464 = vpop.permute.xlu0 %463
    %v466 = vmul.f32 %v448, %v464
    %v467 = vpack.c.bf16 %v466, %v466
    %v470 = vunpack.c.l.s4 1966171168
    %v471 = vunpack.c.0.s8 %v470
    %v472 = vlaneseq
    %v473 = vshrl.u32 %v472, 7
    %v474 = vsub.s32 %v471, %v473
    %v475 = vrot.slane %v467, %v474
    %v477 = vunpack.c.l.s4 1966171168
    %v478 = vunpack.c.0.s8 %v477
    %v479 = vlaneseq
    %v480 = vshrl.u32 %v479, 7
    %v481 = vsub.s32 %v478, %v480
    %v482 = vrot.slane %v475, %v481
    %483 = vrot.lane.b32.xlu0 %v482, 64
    %v484 = vpop.permute.xlu0 %483
    %s486 = scalar_lea.vmem [#allocation2], 1
    %487 = vst.msk [vmem:[%s486] sm:$0x1] %vm393, %v484
    %s488 = scalar_lea.vmem [#allocation3], 4
    %v489 = vld [vmem:[%s488] sm:$0x3]
    %490 = vrot.lane.b32.xlu0 %v467, 64
    %v491 = vpop.permute.xlu0 %490
    %v493 = vsel %vm196, %v491, 0
    %495 = vmatprep.subr.bf16.mxu0 0
    %496 = vmatpush1.bf16.msra.mxu0 0
    %497 = vmatprep.subr.bf16.mxu0 0
    %498 = vmatpush1.bf16.msra.mxu0 0
    %499 = vmatprep.subr.bf16.mxu0 0
    %500 = vmatpush1.bf16.msra.mxu0 0
    %501 = vmatprep.subr.bf16.mxu0 0
    %502 = vmatpush1.bf16.msra.mxu0 0
    %503 = vmatprep.subr.bf16.mxu0 0
    %504 = vmatpush1.bf16.msra.mxu0 0
    %505 = vmatprep.subr.bf16.mxu0 0
    %506 = vmatpush1.bf16.msra.mxu0 0
    %507 = vmatprep.subr.bf16.mxu0 0
    %508 = vmatpush1.bf16.msra.mxu0 %v303
    %509 = vmatprep.subr.bf16.mxu0 0
    %510 = vmatpush1.bf16.msra.mxu0 %v302
    %511 = vmatprep.subr.bf16.mxu0 0
    %512 = vmatpush2.bf16.msra.mxu0 0
    %513 = vmatprep.subr.bf16.mxu0 0
    %514 = vmatpush2.bf16.msra.mxu0 0
    %515 = vmatprep.subr.bf16.mxu0 0
    %516 = vmatpush2.bf16.msra.mxu0 0
    %517 = vmatprep.subr.bf16.mxu0 0
    %518 = vmatpush2.bf16.msra.mxu0 0
    %519 = vmatprep.subr.bf16.mxu0 0
    %520 = vmatpush2.bf16.msra.mxu0 0
    %521 = vmatprep.subr.bf16.mxu0 0
    %522 = vmatpush2.bf16.msra.mxu0 0
    %523 = vmatprep.subr.bf16.mxu0 0
    %524 = vmatpush2.bf16.msra.mxu0 0
    %525 = vmatprep.subr.bf16.mxu0 0
    %526 = vmatpush2.bf16.msra.mxu0 0
    %527 = vmatprep.mubr.bf16.mxu0 0
    %528 = vmatmul.mubr.bf16.gmra.mxu0 %v493
    %v529 = vpop.f32.mrf.mxu0
    %v530 = vadd.f32 0.0, %v529
    %v531 = vpop.f32.mrf.mxu0
    %v532 = vpop.f32.mrf.mxu0
    %v533 = vpop.f32.mrf.mxu0
    %534 = vdwg.mxu0
    %v535 = vadd.f32 %v489, %v530
    %v536 = vxor.u32 %v535, 2147483648
    %v537 = vmul.f32 %v536, 1.442695
    %v538 = vpow.pop %v537
    %v539 = vadd.f32 %v538, 1.0
    %v540 = vrcp.pop %v539
    %v541 = vmul.f32 1.0, %v540
    %v542 = vtanh.pop %v535
    %v543 = vmul.f32 %v541, %v460
    %545 = vrot.lane.b32.xlu0 %v542, 32
    %v546 = vpop.permute.xlu0 %545
    %v548 = vmul.f32 %v541, %v546
    %550 = vrot.lane.b32.xlu0 %v548, 32
    %v551 = vpop.permute.xlu0 %550
    %v553 = vadd.f32 %v543, %v551
    %v554 = vtanh.pop %v553
    %556 = vrot.lane.b32.xlu0 %v554, 32
    %v557 = vpop.permute.xlu0 %556
    %v559 = vmul.f32 %v541, %v557
    %v560 = vpack.c.bf16 %v559, %v559
    %v563 = vunpack.c.l.s4 1966171168
    %v564 = vunpack.c.0.s8 %v563
    %v565 = vlaneseq
    %v566 = vshrl.u32 %v565, 7
    %v567 = vsub.s32 %v564, %v566
    %v568 = vrot.slane %v560, %v567
    %v570 = vunpack.c.l.s4 1966171168
    %v571 = vunpack.c.0.s8 %v570
    %v572 = vlaneseq
    %v573 = vshrl.u32 %v572, 7
    %v574 = vsub.s32 %v571, %v573
    %v575 = vrot.slane %v568, %v574
    %576 = vrot.lane.b32.xlu0 %v575, 64
    %v577 = vpop.permute.xlu0 %576
    %s579 = scalar_lea.vmem [#allocation2], 2
    %580 = vst.msk [vmem:[%s579] sm:$0x1] %vm393, %v577
    %s581 = scalar_lea.vmem [#allocation3], 6
    %v582 = vld [vmem:[%s581] sm:$0x3]
    %583 = vrot.lane.b32.xlu0 %v560, 64
    %v584 = vpop.permute.xlu0 %583
    %v586 = vsel %vm196, %v584, 0
    %588 = vmatprep.subr.bf16.mxu0 0
    %589 = vmatpush1.bf16.msra.mxu0 0
    %590 = vmatprep.subr.bf16.mxu0 0
    %591 = vmatpush1.bf16.msra.mxu0 0
    %592 = vmatprep.subr.bf16.mxu0 0
    %593 = vmatpush1.bf16.msra.mxu0 0
    %594 = vmatprep.subr.bf16.mxu0 0
    %595 = vmatpush1.bf16.msra.mxu0 0
    %596 = vmatprep.subr.bf16.mxu0 0
    %597 = vmatpush1.bf16.msra.mxu0 0
    %598 = vmatprep.subr.bf16.mxu0 0
    %599 = vmatpush1.bf16.msra.mxu0 0
    %600 = vmatprep.subr.bf16.mxu0 0
    %601 = vmatpush1.bf16.msra.mxu0 %v303
    %602 = vmatprep.subr.bf16.mxu0 0
    %603 = vmatpush1.bf16.msra.mxu0 %v302
    %604 = vmatprep.subr.bf16.mxu0 0
    %605 = vmatpush2.bf16.msra.mxu0 0
    %606 = vmatprep.subr.bf16.mxu0 0
    %607 = vmatpush2.bf16.msra.mxu0 0
    %608 = vmatprep.subr.bf16.mxu0 0
    %609 = vmatpush2.bf16.msra.mxu0 0
    %610 = vmatprep.subr.bf16.mxu0 0
    %611 = vmatpush2.bf16.msra.mxu0 0
    %612 = vmatprep.subr.bf16.mxu0 0
    %613 = vmatpush2.bf16.msra.mxu0 0
    %614 = vmatprep.subr.bf16.mxu0 0
    %615 = vmatpush2.bf16.msra.mxu0 0
    %616 = vmatprep.subr.bf16.mxu0 0
    %617 = vmatpush2.bf16.msra.mxu0 0
    %618 = vmatprep.subr.bf16.mxu0 0
    %619 = vmatpush2.bf16.msra.mxu0 0
    %620 = vmatprep.mubr.bf16.mxu0 0
    %621 = vmatmul.mubr.bf16.gmra.mxu0 %v586
    %v622 = vpop.f32.mrf.mxu0
    %v623 = vadd.f32 0.0, %v622
    %v624 = vpop.f32.mrf.mxu0
    %v625 = vpop.f32.mrf.mxu0
    %v626 = vpop.f32.mrf.mxu0
    %627 = vdwg.mxu0
    %v628 = vadd.f32 %v582, %v623
    %v629 = vxor.u32 %v628, 2147483648
    %v630 = vmul.f32 %v629, 1.442695
    %v631 = vpow.pop %v630
    %v632 = vadd.f32 %v631, 1.0
    %v633 = vrcp.pop %v632
    %v634 = vmul.f32 1.0, %v633
    %v635 = vtanh.pop %v628
    %v636 = vmul.f32 %v634, %v553
    %638 = vrot.lane.b32.xlu0 %v635, 32
    %v639 = vpop.permute.xlu0 %638
    %v641 = vmul.f32 %v634, %v639
    %643 = vrot.lane.b32.xlu0 %v641, 32
    %v644 = vpop.permute.xlu0 %643
    %v646 = vadd.f32 %v636, %v644
    %v647 = vtanh.pop %v646
    %649 = vrot.lane.b32.xlu0 %v647, 32
    %v650 = vpop.permute.xlu0 %649
    %v652 = vmul.f32 %v634, %v650
    %v653 = vpack.c.bf16 %v652, %v652
    %v656 = vunpack.c.l.s4 1966171168
    %v657 = vunpack.c.0.s8 %v656
    %v658 = vlaneseq
    %v659 = vshrl.u32 %v658, 7
    %v660 = vsub.s32 %v657, %v659
    %v661 = vrot.slane %v653, %v660
    %v663 = vunpack.c.l.s4 1966171168
    %v664 = vunpack.c.0.s8 %v663
    %v665 = vlaneseq
    %v666 = vshrl.u32 %v665, 7
    %v667 = vsub.s32 %v664, %v666
    %v668 = vrot.slane %v661, %v667
    %669 = vrot.lane.b32.xlu0 %v668, 64
    %v670 = vpop.permute.xlu0 %669
    %s672 = scalar_lea.vmem [#allocation2], 3
    %673 = vst.msk [vmem:[%s672] sm:$0x1] %vm393, %v670
    %s674 = scalar_lea.vmem [#allocation3], 8
    %v675 = vld [vmem:[%s674] sm:$0x3]
    %676 = vrot.lane.b32.xlu0 %v653, 64
    %v677 = vpop.permute.xlu0 %676
    %v679 = vsel %vm196, %v677, 0
    %681 = vmatprep.subr.bf16.mxu0 0
    %682 = vmatpush1.bf16.msra.mxu0 0
    %683 = vmatprep.subr.bf16.mxu0 0
    %684 = vmatpush1.bf16.msra.mxu0 0
    %685 = vmatprep.subr.bf16.mxu0 0
    %686 = vmatpush1.bf16.msra.mxu0 0
    %687 = vmatprep.subr.bf16.mxu0 0
    %688 = vmatpush1.bf16.msra.mxu0 0
    %689 = vmatprep.subr.bf16.mxu0 0
    %690 = vmatpush1.bf16.msra.mxu0 0
    %691 = vmatprep.subr.bf16.mxu0 0
    %692 = vmatpush1.bf16.msra.mxu0 0
    %693 = vmatprep.subr.bf16.mxu0 0
    %694 = vmatpush1.bf16.msra.mxu0 %v303
    %695 = vmatprep.subr.bf16.mxu0 0
    %696 = vmatpush1.bf16.msra.mxu0 %v302
    %697 = vmatprep.subr.bf16.mxu0 0
    %698 = vmatpush2.bf16.msra.mxu0 0
    %699 = vmatprep.subr.bf16.mxu0 0
    %700 = vmatpush2.bf16.msra.mxu0 0
    %701 = vmatprep.subr.bf16.mxu0 0
    %702 = vmatpush2.bf16.msra.mxu0 0
    %703 = vmatprep.subr.bf16.mxu0 0
    %704 = vmatpush2.bf16.msra.mxu0 0
    %705 = vmatprep.subr.bf16.mxu0 0
    %706 = vmatpush2.bf16.msra.mxu0 0
    %707 = vmatprep.subr.bf16.mxu0 0
    %708 = vmatpush2.bf16.msra.mxu0 0
    %709 = vmatprep.subr.bf16.mxu0 0
    %710 = vmatpush2.bf16.msra.mxu0 0
    %711 = vmatprep.subr.bf16.mxu0 0
    %712 = vmatpush2.bf16.msra.mxu0 0
    %713 = vmatprep.mubr.bf16.mxu0 0
    %714 = vmatmul.mubr.bf16.gmra.mxu0 %v679
    %v715 = vpop.f32.mrf.mxu0
    %v716 = vadd.f32 0.0, %v715
    %v717 = vpop.f32.mrf.mxu0
    %v718 = vpop.f32.mrf.mxu0
    %v719 = vpop.f32.mrf.mxu0
    %720 = vdwg.mxu0
    %v721 = vadd.f32 %v675, %v716
    %v722 = vxor.u32 %v721, 2147483648
    %v723 = vmul.f32 %v722, 1.442695
    %v724 = vpow.pop %v723
    %v725 = vadd.f32 %v724, 1.0
    %v726 = vrcp.pop %v725
    %v727 = vmul.f32 1.0, %v726
    %v728 = vtanh.pop %v721
    %v729 = vmul.f32 %v727, %v646
    %731 = vrot.lane.b32.xlu0 %v728, 32
    %v732 = vpop.permute.xlu0 %731
    %v734 = vmul.f32 %v727, %v732
    %736 = vrot.lane.b32.xlu0 %v734, 32
    %v737 = vpop.permute.xlu0 %736
    %v739 = vadd.f32 %v729, %v737
    %v740 = vtanh.pop %v739
    %742 = vrot.lane.b32.xlu0 %v740, 32
    %v743 = vpop.permute.xlu0 %742
    %v745 = vmul.f32 %v727, %v743
    %v746 = vpack.c.bf16 %v745, %v745
    %v749 = vunpack.c.l.s4 1966171168
    %v750 = vunpack.c.0.s8 %v749
    %v751 = vlaneseq
    %v752 = vshrl.u32 %v751, 7
    %v753 = vsub.s32 %v750, %v752
    %v754 = vrot.slane %v746, %v753
    %v756 = vunpack.c.l.s4 1966171168
    %v757 = vunpack.c.0.s8 %v756
    %v758 = vlaneseq
    %v759 = vshrl.u32 %v758, 7
    %v760 = vsub.s32 %v757, %v759
    %v761 = vrot.slane %v754, %v760
    %762 = vrot.lane.b32.xlu0 %v761, 64
    %v763 = vpop.permute.xlu0 %762
    %s765 = scalar_lea.vmem [#allocation2], 4
    %766 = vst.msk [vmem:[%s765] sm:$0x1] %vm393, %v763
    %s767 = scalar_lea.vmem [#allocation3], 10
    %v768 = vld [vmem:[%s767] sm:$0x3]
    %769 = vrot.lane.b32.xlu0 %v746, 64
    %v770 = vpop.permute.xlu0 %769
    %v772 = vsel %vm196, %v770, 0
    %774 = vmatprep.subr.bf16.mxu0 0
    %775 = vmatpush1.bf16.msra.mxu0 0
    %776 = vmatprep.subr.bf16.mxu0 0
    %777 = vmatpush1.bf16.msra.mxu0 0
    %778 = vmatprep.subr.bf16.mxu0 0
    %779 = vmatpush1.bf16.msra.mxu0 0
    %780 = vmatprep.subr.bf16.mxu0 0
    %781 = vmatpush1.bf16.msra.mxu0 0
    %782 = vmatprep.subr.bf16.mxu0 0
    %783 = vmatpush1.bf16.msra.mxu0 0
    %784 = vmatprep.subr.bf16.mxu0 0
    %785 = vmatpush1.bf16.msra.mxu0 0
    %786 = vmatprep.subr.bf16.mxu0 0
    %787 = vmatpush1.bf16.msra.mxu0 %v303
    %788 = vmatprep.subr.bf16.mxu0 0
    %789 = vmatpush1.bf16.msra.mxu0 %v302
    %790 = vmatprep.subr.bf16.mxu0 0
    %791 = vmatpush2.bf16.msra.mxu0 0
    %792 = vmatprep.subr.bf16.mxu0 0
    %793 = vmatpush2.bf16.msra.mxu0 0
    %794 = vmatprep.subr.bf16.mxu0 0
    %795 = vmatpush2.bf16.msra.mxu0 0
    %796 = vmatprep.subr.bf16.mxu0 0
    %797 = vmatpush2.bf16.msra.mxu0 0
    %798 = vmatprep.subr.bf16.mxu0 0
    %799 = vmatpush2.bf16.msra.mxu0 0
    %800 = vmatprep.subr.bf16.mxu0 0
    %801 = vmatpush2.bf16.msra.mxu0 0
    %802 = vmatprep.subr.bf16.mxu0 0
    %803 = vmatpush2.bf16.msra.mxu0 0
    %804 = vmatprep.subr.bf16.mxu0 0
    %805 = vmatpush2.bf16.msra.mxu0 0
    %806 = vmatprep.mubr.bf16.mxu0 0
    %807 = vmatmul.mubr.bf16.gmra.mxu0 %v772
    %v808 = vpop.f32.mrf.mxu0
    %v809 = vadd.f32 0.0, %v808
    %v810 = vpop.f32.mrf.mxu0
    %v811 = vpop.f32.mrf.mxu0
    %v812 = vpop.f32.mrf.mxu0
    %813 = vdwg.mxu0
    %v814 = vadd.f32 %v768, %v809
    %v815 = vxor.u32 %v814, 2147483648
    %v816 = vmul.f32 %v815, 1.442695
    %v817 = vpow.pop %v816
    %v818 = vadd.f32 %v817, 1.0
    %v819 = vrcp.pop %v818
    %v820 = vmul.f32 1.0, %v819
    %v821 = vtanh.pop %v814
    %v822 = vmul.f32 %v820, %v739
    %824 = vrot.lane.b32.xlu0 %v821, 32
    %v825 = vpop.permute.xlu0 %824
    %v827 = vmul.f32 %v820, %v825
    %829 = vrot.lane.b32.xlu0 %v827, 32
    %v830 = vpop.permute.xlu0 %829
    %v832 = vadd.f32 %v822, %v830
    %v833 = vtanh.pop %v832
    %835 = vrot.lane.b32.xlu0 %v833, 32
    %v836 = vpop.permute.xlu0 %835
    %v838 = vmul.f32 %v820, %v836
    %v839 = vpack.c.bf16 %v838, %v838
    %v842 = vunpack.c.l.s4 1966171168
    %v843 = vunpack.c.0.s8 %v842
    %v844 = vlaneseq
    %v845 = vshrl.u32 %v844, 7
    %v846 = vsub.s32 %v843, %v845
    %v847 = vrot.slane %v839, %v846
    %v849 = vunpack.c.l.s4 1966171168
    %v850 = vunpack.c.0.s8 %v849
    %v851 = vlaneseq
    %v852 = vshrl.u32 %v851, 7
    %v853 = vsub.s32 %v850, %v852
    %v854 = vrot.slane %v847, %v853
    %855 = vrot.lane.b32.xlu0 %v854, 64
    %v856 = vpop.permute.xlu0 %855
    %s858 = scalar_lea.vmem [#allocation2], 5
    %859 = vst.msk [vmem:[%s858] sm:$0x1] %vm393, %v856
    %s860 = scalar_lea.vmem [#allocation3], 12
    %v861 = vld [vmem:[%s860] sm:$0x3]
    %862 = vrot.lane.b32.xlu0 %v839, 64
    %v863 = vpop.permute.xlu0 %862
    %v865 = vsel %vm196, %v863, 0
    %867 = vmatprep.subr.bf16.mxu0 0
    %868 = vmatpush1.bf16.msra.mxu0 0
    %869 = vmatprep.subr.bf16.mxu0 0
    %870 = vmatpush1.bf16.msra.mxu0 0
    %871 = vmatprep.subr.bf16.mxu0 0
    %872 = vmatpush1.bf16.msra.mxu0 0
    %873 = vmatprep.subr.bf16.mxu0 0
    %874 = vmatpush1.bf16.msra.mxu0 0
    %875 = vmatprep.subr.bf16.mxu0 0
    %876 = vmatpush1.bf16.msra.mxu0 0
    %877 = vmatprep.subr.bf16.mxu0 0
    %878 = vmatpush1.bf16.msra.mxu0 0
    %879 = vmatprep.subr.bf16.mxu0 0
    %880 = vmatpush1.bf16.msra.mxu0 %v303
    %881 = vmatprep.subr.bf16.mxu0 0
    %882 = vmatpush1.bf16.msra.mxu0 %v302
    %883 = vmatprep.subr.bf16.mxu0 0
    %884 = vmatpush2.bf16.msra.mxu0 0
    %885 = vmatprep.subr.bf16.mxu0 0
    %886 = vmatpush2.bf16.msra.mxu0 0
    %887 = vmatprep.subr.bf16.mxu0 0
    %888 = vmatpush2.bf16.msra.mxu0 0
    %889 = vmatprep.subr.bf16.mxu0 0
    %890 = vmatpush2.bf16.msra.mxu0 0
    %891 = vmatprep.subr.bf16.mxu0 0
    %892 = vmatpush2.bf16.msra.mxu0 0
    %893 = vmatprep.subr.bf16.mxu0 0
    %894 = vmatpush2.bf16.msra.mxu0 0
    %895 = vmatprep.subr.bf16.mxu0 0
    %896 = vmatpush2.bf16.msra.mxu0 0
    %897 = vmatprep.subr.bf16.mxu0 0
    %898 = vmatpush2.bf16.msra.mxu0 0
    %899 = vmatprep.mubr.bf16.mxu0 0
    %900 = vmatmul.mubr.bf16.gmra.mxu0 %v865
    %v901 = vpop.f32.mrf.mxu0
    %v902 = vadd.f32 0.0, %v901
    %v903 = vpop.f32.mrf.mxu0
    %v904 = vpop.f32.mrf.mxu0
    %v905 = vpop.f32.mrf.mxu0
    %906 = vdwg.mxu0
    %v907 = vadd.f32 %v861, %v902
    %v908 = vxor.u32 %v907, 2147483648
    %v909 = vmul.f32 %v908, 1.442695
    %v910 = vpow.pop %v909
    %v911 = vadd.f32 %v910, 1.0
    %v912 = vrcp.pop %v911
    %v913 = vmul.f32 1.0, %v912
    %v914 = vtanh.pop %v907
    %v915 = vmul.f32 %v913, %v832
    %917 = vrot.lane.b32.xlu0 %v914, 32
    %v918 = vpop.permute.xlu0 %917
    %v920 = vmul.f32 %v913, %v918
    %922 = vrot.lane.b32.xlu0 %v920, 32
    %v923 = vpop.permute.xlu0 %922
    %v925 = vadd.f32 %v915, %v923
    %v926 = vtanh.pop %v925
    %928 = vrot.lane.b32.xlu0 %v926, 32
    %v929 = vpop.permute.xlu0 %928
    %v931 = vmul.f32 %v913, %v929
    %v932 = vpack.c.bf16 %v931, %v931
    %v935 = vunpack.c.l.s4 1966171168
    %v936 = vunpack.c.0.s8 %v935
    %v937 = vlaneseq
    %v938 = vshrl.u32 %v937, 7
    %v939 = vsub.s32 %v936, %v938
    %v940 = vrot.slane %v932, %v939
    %v942 = vunpack.c.l.s4 1966171168
    %v943 = vunpack.c.0.s8 %v942
    %v944 = vlaneseq
    %v945 = vshrl.u32 %v944, 7
    %v946 = vsub.s32 %v943, %v945
    %v947 = vrot.slane %v940, %v946
    %948 = vrot.lane.b32.xlu0 %v947, 64
    %v949 = vpop.permute.xlu0 %948
    %s951 = scalar_lea.vmem [#allocation2], 6
    %952 = vst.msk [vmem:[%s951] sm:$0x1] %vm393, %v949
    %s953 = scalar_lea.vmem [#allocation3], 14
    %v954 = vld [vmem:[%s953] sm:$0x3]
    %955 = vrot.lane.b32.xlu0 %v932, 64
    %v956 = vpop.permute.xlu0 %955
    %v958 = vsel %vm196, %v956, 0
    %960 = vmatprep.subr.bf16.mxu0 0
    %961 = vmatpush1.bf16.msra.mxu0 0
    %962 = vmatprep.subr.bf16.mxu0 0
    %963 = vmatpush1.bf16.msra.mxu0 0
    %964 = vmatprep.subr.bf16.mxu0 0
    %965 = vmatpush1.bf16.msra.mxu0 0
    %966 = vmatprep.subr.bf16.mxu0 0
    %967 = vmatpush1.bf16.msra.mxu0 0
    %968 = vmatprep.subr.bf16.mxu0 0
    %969 = vmatpush1.bf16.msra.mxu0 0
    %970 = vmatprep.subr.bf16.mxu0 0
    %971 = vmatpush1.bf16.msra.mxu0 0
    %972 = vmatprep.subr.bf16.mxu0 0
    %973 = vmatpush1.bf16.msra.mxu0 %v303
    %974 = vmatprep.subr.bf16.mxu0 0
    %975 = vmatpush1.bf16.msra.mxu0 %v302
    %976 = vmatprep.subr.bf16.mxu0 0
    %977 = vmatpush2.bf16.msra.mxu0 0
    %978 = vmatprep.subr.bf16.mxu0 0
    %979 = vmatpush2.bf16.msra.mxu0 0
    %980 = vmatprep.subr.bf16.mxu0 0
    %981 = vmatpush2.bf16.msra.mxu0 0
    %982 = vmatprep.subr.bf16.mxu0 0
    %983 = vmatpush2.bf16.msra.mxu0 0
    %984 = vmatprep.subr.bf16.mxu0 0
    %985 = vmatpush2.bf16.msra.mxu0 0
    %986 = vmatprep.subr.bf16.mxu0 0
    %987 = vmatpush2.bf16.msra.mxu0 0
    %988 = vmatprep.subr.bf16.mxu0 0
    %989 = vmatpush2.bf16.msra.mxu0 0
    %990 = vmatprep.subr.bf16.mxu0 0
    %991 = vmatpush2.bf16.msra.mxu0 0
    %992 = vmatprep.mubr.bf16.mxu0 0
    %993 = vmatmul.mubr.bf16.gmra.mxu0 %v958
    %v994 = vpop.f32.mrf.mxu0
    %v995 = vadd.f32 0.0, %v994
    %v996 = vpop.f32.mrf.mxu0
    %v997 = vpop.f32.mrf.mxu0
    %v998 = vpop.f32.mrf.mxu0
    %999 = vdwg.mxu0
    %v1000 = vadd.f32 %v954, %v995
    %v1001 = vxor.u32 %v1000, 2147483648
    %v1002 = vmul.f32 %v1001, 1.442695
    %v1003 = vpow.pop %v1002
    %v1004 = vadd.f32 %v1003, 1.0
    %v1005 = vrcp.pop %v1004
    %v1006 = vmul.f32 1.0, %v1005
    %v1007 = vtanh.pop %v1000
    %v1008 = vmul.f32 %v1006, %v925
    %1010 = vrot.lane.b32.xlu0 %v1007, 32
    %v1011 = vpop.permute.xlu0 %1010
    %v1013 = vmul.f32 %v1006, %v1011
    %1015 = vrot.lane.b32.xlu0 %v1013, 32
    %v1016 = vpop.permute.xlu0 %1015
    %v1018 = vadd.f32 %v1008, %v1016
    %v1019 = vtanh.pop %v1018
    %1021 = vrot.lane.b32.xlu0 %v1019, 32
    %v1022 = vpop.permute.xlu0 %1021
    %v1024 = vmul.f32 %v1006, %v1022
    %v1025 = vpack.c.bf16 %v1024, %v1024
    %v1028 = vunpack.c.l.s4 1966171168
    %v1029 = vunpack.c.0.s8 %v1028
    %v1030 = vlaneseq
    %v1031 = vshrl.u32 %v1030, 7
    %v1032 = vsub.s32 %v1029, %v1031
    %v1033 = vrot.slane %v1025, %v1032
    %v1035 = vunpack.c.l.s4 1966171168
    %v1036 = vunpack.c.0.s8 %v1035
    %v1037 = vlaneseq
    %v1038 = vshrl.u32 %v1037, 7
    %v1039 = vsub.s32 %v1036, %v1038
    %v1040 = vrot.slane %v1033, %v1039
    %1041 = vrot.lane.b32.xlu0 %v1040, 64
    %v1042 = vpop.permute.xlu0 %1041
    %s1044 = scalar_lea.vmem [#allocation2], 7
    %1045 = vst.msk [vmem:[%s1044] sm:$0x1] %vm393, %v1042
    %v1046 = vtanh.pop %v1024
    %v1047 = vpack.c.bf16 %v1046, %v1046
    %v1048 = vld [vmem:[#allocation10] sm:$0xf]
    %v1049 = vld [vmem:[#allocation10 + $0x4] sm:$0xf]
    %v1050 = vld [vmem:[#allocation10 + $0x8] sm:$0xf]
    %v1051 = vld [vmem:[#allocation10 + $0xc] sm:$0xf]
    %v1052 = vpack.c.bf16 %v1019, %v1019
    %v1053 = vld [vmem:[#allocation10 + $0x10] sm:$0xf]
    %v1054 = vld [vmem:[#allocation10 + $0x14] sm:$0xf]
    %v1055 = vld [vmem:[#allocation10 + $0x18] sm:$0xf]
    %v1056 = vld [vmem:[#allocation10 + $0x1c] sm:$0xf]
    %1058 = vrot.lane.b32.xlu0 %v1052, 96
    %v1059 = vpop.permute.xlu0 %1058
    %v1064 = vunpack.c.l.b16 %v1053
    %v1065 = vunpack.c.l.b16 %v1054
    %v1066 = vunpack.c.l.b16 %v1055
    %v1067 = vunpack.c.l.b16 %v1056
    %v1068 = vpack.c.b16 %v1065, %v1064
    %v1069 = vpack.c.b16 %v1067, %v1066
    %v1073 = vsel %vm196, %v1059, 0
    %1075 = vmatprep.subr.bf16.mxu0 0
    %1076 = vmatpush1.bf16.msra.mxu0 0
    %1077 = vmatprep.subr.bf16.mxu0 0
    %1078 = vmatpush1.bf16.msra.mxu0 0
    %1079 = vmatprep.subr.bf16.mxu0 0
    %1080 = vmatpush1.bf16.msra.mxu0 0
    %1081 = vmatprep.subr.bf16.mxu0 0
    %1082 = vmatpush1.bf16.msra.mxu0 0
    %1083 = vmatprep.subr.bf16.mxu0 0
    %1084 = vmatpush1.bf16.msra.mxu0 0
    %1085 = vmatprep.subr.bf16.mxu0 0
    %1086 = vmatpush1.bf16.msra.mxu0 0
    %1087 = vmatprep.subr.bf16.mxu0 0
    %1088 = vmatpush1.bf16.msra.mxu0 %v1069
    %1089 = vmatprep.subr.bf16.mxu0 0
    %1090 = vmatpush1.bf16.msra.mxu0 %v1068
    %1091 = vmatprep.subr.bf16.mxu0 0
    %1092 = vmatpush2.bf16.msra.mxu0 0
    %1093 = vmatprep.subr.bf16.mxu0 0
    %1094 = vmatpush2.bf16.msra.mxu0 0
    %1095 = vmatprep.subr.bf16.mxu0 0
    %1096 = vmatpush2.bf16.msra.mxu0 0
    %1097 = vmatprep.subr.bf16.mxu0 0
    %1098 = vmatpush2.bf16.msra.mxu0 0
    %1099 = vmatprep.subr.bf16.mxu0 0
    %1100 = vmatpush2.bf16.msra.mxu0 0
    %1101 = vmatprep.subr.bf16.mxu0 0
    %1102 = vmatpush2.bf16.msra.mxu0 0
    %1103 = vmatprep.subr.bf16.mxu0 0
    %1104 = vmatpush2.bf16.msra.mxu0 0
    %1105 = vmatprep.subr.bf16.mxu0 0
    %1106 = vmatpush2.bf16.msra.mxu0 0
    %1107 = vmatprep.mubr.bf16.mxu0 0
    %1108 = vmatmul.mubr.bf16.gmra.mxu0 %v1073
    %v1109 = vpop.f32.mrf.mxu0
    %v1110 = vadd.f32 0.0, %v1109
    %v1111 = vpop.f32.mrf.mxu0
    %v1112 = vpop.f32.mrf.mxu0
    %v1113 = vpop.f32.mrf.mxu0
    %1114 = vdwg.mxu0
    %1116 = vrot.lane.b32.xlu0 %v1047, 64
    %v1117 = vpop.permute.xlu0 %1116
    %v1122 = vunpack.c.l.b16 %v1048
    %v1123 = vunpack.c.l.b16 %v1049
    %v1124 = vunpack.c.l.b16 %v1050
    %v1125 = vunpack.c.l.b16 %v1051
    %v1126 = vpack.c.b16 %v1123, %v1122
    %v1127 = vpack.c.b16 %v1125, %v1124
    %v1131 = vsel %vm196, %v1117, 0
    %1133 = vmatprep.subr.bf16.mxu0 0
    %1134 = vmatpush1.bf16.msra.mxu0 0
    %1135 = vmatprep.subr.bf16.mxu0 0
    %1136 = vmatpush1.bf16.msra.mxu0 0
    %1137 = vmatprep.subr.bf16.mxu0 0
    %1138 = vmatpush1.bf16.msra.mxu0 0
    %1139 = vmatprep.subr.bf16.mxu0 0
    %1140 = vmatpush1.bf16.msra.mxu0 0
    %1141 = vmatprep.subr.bf16.mxu0 0
    %1142 = vmatpush1.bf16.msra.mxu0 0
    %1143 = vmatprep.subr.bf16.mxu0 0
    %1144 = vmatpush1.bf16.msra.mxu0 0
    %1145 = vmatprep.subr.bf16.mxu0 0
    %1146 = vmatpush1.bf16.msra.mxu0 %v1127
    %1147 = vmatprep.subr.bf16.mxu0 0
    %1148 = vmatpush1.bf16.msra.mxu0 %v1126
    %1149 = vmatprep.subr.bf16.mxu0 0
    %1150 = vmatpush2.bf16.msra.mxu0 0
    %1151 = vmatprep.subr.bf16.mxu0 0
    %1152 = vmatpush2.bf16.msra.mxu0 0
    %1153 = vmatprep.subr.bf16.mxu0 0
    %1154 = vmatpush2.bf16.msra.mxu0 0
    %1155 = vmatprep.subr.bf16.mxu0 0
    %1156 = vmatpush2.bf16.msra.mxu0 0
    %1157 = vmatprep.subr.bf16.mxu0 0
    %1158 = vmatpush2.bf16.msra.mxu0 0
    %1159 = vmatprep.subr.bf16.mxu0 0
    %1160 = vmatpush2.bf16.msra.mxu0 0
    %1161 = vmatprep.subr.bf16.mxu0 0
    %1162 = vmatpush2.bf16.msra.mxu0 0
    %1163 = vmatprep.subr.bf16.mxu0 0
    %1164 = vmatpush2.bf16.msra.mxu0 0
    %1165 = vmatprep.mubr.bf16.mxu0 0
    %1166 = vmatmul.mubr.bf16.gmra.mxu0 %v1131
    %v1167 = vpop.f32.mrf.mxu0
    %v1168 = vadd.f32 %v1110, %v1167
    %v1169 = vpop.f32.mrf.mxu0
    %v1170 = vpop.f32.mrf.mxu0
    %v1171 = vpop.f32.mrf.mxu0
    %1172 = vdwg.mxu0
    %s1173 = scalar_lea.vmem [#allocation7], 16
    %v1174 = vld [vmem:[%s1173] sm:$0xf]
    %v1175 = vld [vmem:[%s1173 + $0x4] sm:$0xf]
    %v1176 = vld [vmem:[%s1173 + $0x8] sm:$0xf]
    %v1177 = vld [vmem:[%s1173 + $0xc] sm:$0xf]
    %s1178 = scalar_lea.vmem [#allocation9], 16
    %v1179 = vld [vmem:[%s1178] sm:$0xf]
    %v1180 = vld [vmem:[%s1178 + $0x4] sm:$0xf]
    %v1181 = vld [vmem:[%s1178 + $0x8] sm:$0xf]
    %v1182 = vld [vmem:[%s1178 + $0xc] sm:$0xf]
    %s1183 = scalar_lea.vmem %s3, 1
    %v1184 = vld [vmem:[%s1183] sm:$0x1]
    %v1185 = vld [vmem:[#allocation2] sm:$0x1]
    %v1186 = vld [vmem:[#allocation2 + $0x1] sm:$0x1]
    %v1187 = vld [vmem:[#allocation2 + $0x2] sm:$0x1]
    %v1188 = vld [vmem:[#allocation2 + $0x3] sm:$0x1]
    %v1189 = vld [vmem:[#allocation2 + $0x4] sm:$0x1]
    %v1190 = vld [vmem:[#allocation2 + $0x5] sm:$0x1]
    %v1191 = vld [vmem:[#allocation2 + $0x6] sm:$0x1]
    %v1192 = vld [vmem:[#allocation2 + $0x7] sm:$0x1]
    %v1194 = vlaneseq
    %v1195 = vshrl.u32 %v1194, 7
    %v1196 = vsub.s32 0, %v1195
    %v1197 = vrot.slane %v1184, %v1196
    %v1207 = vcombine.low %v1185, %v1186
    %v1208 = vcombine.low %v1187, %v1188
    %v1209 = vcombine.low %v1189, %v1190
    %v1210 = vcombine.low %v1191, %v1192
    %v1212 = vunpack.c.l.s4 1966171168
    %v1213 = vunpack.c.0.s8 %v1212
    %v1214 = vlaneseq
    %v1215 = vshrl.u32 %v1214, 7
    %v1216 = vsub.s32 %v1213, %v1215
    %v1217 = vrot.slane %v1207, %v1216
    %v1219 = vunpack.c.l.s4 1966171168
    %v1220 = vunpack.c.0.s8 %v1219
    %v1221 = vlaneseq
    %v1222 = vshrl.u32 %v1221, 7
    %v1223 = vsub.s32 %v1220, %v1222
    %v1224 = vrot.slane %v1208, %v1223
    %v1226 = vunpack.c.l.s4 1966171168
    %v1227 = vunpack.c.0.s8 %v1226
    %v1228 = vlaneseq
    %v1229 = vshrl.u32 %v1228, 7
    %v1230 = vsub.s32 %v1227, %v1229
    %v1231 = vrot.slane %v1209, %v1230
    %v1233 = vunpack.c.l.s4 1966171168
    %v1234 = vunpack.c.0.s8 %v1233
    %v1235 = vlaneseq
    %v1236 = vshrl.u32 %v1235, 7
    %v1237 = vsub.s32 %v1234, %v1236
    %v1238 = vrot.slane %v1210, %v1237
    %v1239 = vcombine.low %v1217, %v1224
    %v1240 = vcombine.low %v1231, %v1238
    %v1242 = vunpack.c.l.s4 1966171168
    %v1243 = vunpack.c.0.s8 %v1242
    %v1244 = vlaneseq
    %v1245 = vshrl.u32 %v1244, 7
    %v1246 = vsub.s32 %v1243, %v1245
    %v1247 = vrot.slane %v1239, %v1246
    %v1249 = vunpack.c.l.s4 1966171168
    %v1250 = vunpack.c.0.s8 %v1249
    %v1251 = vlaneseq
    %v1252 = vshrl.u32 %v1251, 7
    %v1253 = vsub.s32 %v1250, %v1252
    %v1254 = vrot.slane %v1240, %v1253
    %v1255 = vcombine.low %v1247, %v1254
    %v1260 = vunpack.c.l.b16 %v1174
    %v1261 = vunpack.c.l.b16 %v1175
    %v1262 = vunpack.c.l.b16 %v1176
    %v1263 = vunpack.c.l.b16 %v1177
    %v1264 = vpack.c.b16 %v1261, %v1260
    %v1265 = vpack.c.b16 %v1263, %v1262
    %v1269 = vsel %vm196, %v1255, 0
    %1271 = vmatprep.subr.bf16.mxu0 0
    %1272 = vmatpush1.bf16.msra.mxu0 0
    %1273 = vmatprep.subr.bf16.mxu0 0
    %1274 = vmatpush1.bf16.msra.mxu0 0
    %1275 = vmatprep.subr.bf16.mxu0 0
    %1276 = vmatpush1.bf16.msra.mxu0 0
    %1277 = vmatprep.subr.bf16.mxu0 0
    %1278 = vmatpush1.bf16.msra.mxu0 0
    %1279 = vmatprep.subr.bf16.mxu0 0
    %1280 = vmatpush1.bf16.msra.mxu0 0
    %1281 = vmatprep.subr.bf16.mxu0 0
    %1282 = vmatpush1.bf16.msra.mxu0 0
    %1283 = vmatprep.subr.bf16.mxu0 0
    %1284 = vmatpush1.bf16.msra.mxu0 %v1265
    %1285 = vmatprep.subr.bf16.mxu0 0
    %1286 = vmatpush1.bf16.msra.mxu0 %v1264
    %1287 = vmatprep.subr.bf16.mxu0 0
    %1288 = vmatpush2.bf16.msra.mxu0 0
    %1289 = vmatprep.subr.bf16.mxu0 0
    %1290 = vmatpush2.bf16.msra.mxu0 0
    %1291 = vmatprep.subr.bf16.mxu0 0
    %1292 = vmatpush2.bf16.msra.mxu0 0
    %1293 = vmatprep.subr.bf16.mxu0 0
    %1294 = vmatpush2.bf16.msra.mxu0 0
    %1295 = vmatprep.subr.bf16.mxu0 0
    %1296 = vmatpush2.bf16.msra.mxu0 0
    %1297 = vmatprep.subr.bf16.mxu0 0
    %1298 = vmatpush2.bf16.msra.mxu0 0
    %1299 = vmatprep.subr.bf16.mxu0 0
    %1300 = vmatpush2.bf16.msra.mxu0 0
    %1301 = vmatprep.subr.bf16.mxu0 0
    %1302 = vmatpush2.bf16.msra.mxu0 0
    %1303 = vmatprep.mubr.bf16.mxu0 0
    %1304 = vmatmul.mubr.bf16.gmra.mxu0 %v1269
    %v1305 = vpop.f32.mrf.mxu0
    %v1306 = vadd.f32 %v1197, %v1305
    %v1307 = vpop.f32.mrf.mxu0
    %v1308 = vpop.f32.mrf.mxu0
    %v1309 = vadd.f32 %v1197, %v1308
    %v1310 = vpop.f32.mrf.mxu0
    %1311 = vdwg.mxu0
    %v1314 = vcombine.high %v1306, %v1306
    %v1316 = vunpack.c.l.s4 1983009808
    %v1317 = vunpack.c.0.s8 %v1316
    %v1318 = vlaneseq
    %v1319 = vshrl.u32 %v1318, 7
    %v1320 = vsub.s32 %v1317, %v1319
    %v1321 = vrot.slane %v1306, %v1320
    %v1323 = vunpack.c.l.s4 1983009808
    %v1324 = vunpack.c.0.s8 %v1323
    %v1325 = vlaneseq
    %v1326 = vshrl.u32 %v1325, 7
    %v1327 = vsub.s32 %v1324, %v1326
    %v1328 = vrot.slane %v1314, %v1327
    %v1329 = vcombine.high %v1321, %v1321
    %v1330 = vcombine.high %v1328, %v1328
    %v1331 = vcombine.high %v1309, %v1309
    %v1333 = vunpack.c.l.s4 1983009808
    %v1334 = vunpack.c.0.s8 %v1333
    %v1335 = vlaneseq
    %v1336 = vshrl.u32 %v1335, 7
    %v1337 = vsub.s32 %v1334, %v1336
    %v1338 = vrot.slane %v1309, %v1337
    %v1340 = vunpack.c.l.s4 1983009808
    %v1341 = vunpack.c.0.s8 %v1340
    %v1342 = vlaneseq
    %v1343 = vshrl.u32 %v1342, 7
    %v1344 = vsub.s32 %v1341, %v1343
    %v1345 = vrot.slane %v1331, %v1344
    %v1346 = vcombine.high %v1338, %v1338
    %v1347 = vcombine.high %v1345, %v1345
    %1356 = vst [vmem:[#allocation3] sm:$0x3] %v1321
    %1357 = vst [vmem:[#allocation3 + $0x2] sm:$0x3] %v1329
    %1358 = vst [vmem:[#allocation3 + $0x4] sm:$0x3] %v1328
    %1359 = vst [vmem:[#allocation3 + $0x6] sm:$0x3] %v1330
    %1360 = vst [vmem:[#allocation3 + $0x8] sm:$0x3] %v1338
    %1361 = vst [vmem:[#allocation3 + $0xa] sm:$0x3] %v1346
    %1362 = vst [vmem:[#allocation3 + $0xc] sm:$0x3] %v1345
    %1363 = vst [vmem:[#allocation3 + $0xe] sm:$0x3] %v1347
    %v1364 = vld [vmem:[#allocation3] sm:$0x3]
    %v1369 = vunpack.c.l.b16 %v1179
    %v1370 = vunpack.c.l.b16 %v1180
    %v1371 = vunpack.c.l.b16 %v1181
    %v1372 = vunpack.c.l.b16 %v1182
    %v1373 = vpack.c.b16 %v1370, %v1369
    %v1374 = vpack.c.b16 %v1372, %v1371
    %1377 = vmatprep.subr.bf16.mxu0 0
    %1378 = vmatpush1.bf16.msra.mxu0 0
    %1379 = vmatprep.subr.bf16.mxu0 0
    %1380 = vmatpush1.bf16.msra.mxu0 0
    %1381 = vmatprep.subr.bf16.mxu0 0
    %1382 = vmatpush1.bf16.msra.mxu0 0
    %1383 = vmatprep.subr.bf16.mxu0 0
    %1384 = vmatpush1.bf16.msra.mxu0 0
    %1385 = vmatprep.subr.bf16.mxu0 0
    %1386 = vmatpush1.bf16.msra.mxu0 0
    %1387 = vmatprep.subr.bf16.mxu0 0
    %1388 = vmatpush1.bf16.msra.mxu0 0
    %1389 = vmatprep.subr.bf16.mxu0 0
    %1390 = vmatpush1.bf16.msra.mxu0 %v1374
    %1391 = vmatprep.subr.bf16.mxu0 0
    %1392 = vmatpush1.bf16.msra.mxu0 %v1373
    %1393 = vmatprep.subr.bf16.mxu0 0
    %1394 = vmatpush2.bf16.msra.mxu0 0
    %1395 = vmatprep.subr.bf16.mxu0 0
    %1396 = vmatpush2.bf16.msra.mxu0 0
    %1397 = vmatprep.subr.bf16.mxu0 0
    %1398 = vmatpush2.bf16.msra.mxu0 0
    %1399 = vmatprep.subr.bf16.mxu0 0
    %1400 = vmatpush2.bf16.msra.mxu0 0
    %1401 = vmatprep.subr.bf16.mxu0 0
    %1402 = vmatpush2.bf16.msra.mxu0 0
    %1403 = vmatprep.subr.bf16.mxu0 0
    %1404 = vmatpush2.bf16.msra.mxu0 0
    %1405 = vmatprep.subr.bf16.mxu0 0
    %1406 = vmatpush2.bf16.msra.mxu0 0
    %1407 = vmatprep.subr.bf16.mxu0 0
    %1408 = vmatpush2.bf16.msra.mxu0 0
    %1409 = vmatprep.mubr.bf16.mxu0 0
    %1410 = vmatmul.mubr.bf16.gmra.mxu0 %v307
    %v1411 = vpop.f32.mrf.mxu0
    %v1412 = vadd.f32 0.0, %v1411
    %v1413 = vpop.f32.mrf.mxu0
    %v1414 = vpop.f32.mrf.mxu0
    %v1415 = vpop.f32.mrf.mxu0
    %1416 = vdwg.mxu0
    %v1417 = vadd.f32 %v1364, %v1412
    %v1418 = vxor.u32 %v1417, 2147483648
    %v1419 = vmul.f32 %v1418, 1.442695
    %v1420 = vpow.pop %v1419
    %v1421 = vadd.f32 %v1420, 1.0
    %v1422 = vrcp.pop %v1421
    %v1423 = vmul.f32 1.0, %v1422
    %v1424 = vtanh.pop %v1417
    %v1425 = vmul.f32 %v1423, 0.0
    %1427 = vrot.lane.b32.xlu0 %v1424, 32
    %v1428 = vpop.permute.xlu0 %1427
    %v1430 = vmul.f32 %v1423, %v1428
    %1432 = vrot.lane.b32.xlu0 %v1430, 32
    %v1433 = vpop.permute.xlu0 %1432
    %v1435 = vadd.f32 %v1425, %v1433
    %v1436 = vtanh.pop %v1435
    %1438 = vrot.lane.b32.xlu0 %v1436, 32
    %v1439 = vpop.permute.xlu0 %1438
    %v1441 = vmul.f32 %v1423, %v1439
    %v1442 = vld [vmem:[%s395] sm:$0x3]
    %v1443 = vpack.c.bf16 %v1441, %v1441
    %1445 = vrot.lane.b32.xlu0 %v1443, 64
    %v1446 = vpop.permute.xlu0 %1445
    %v1448 = vsel %vm196, %v1446, 0
    %1450 = vmatprep.subr.bf16.mxu0 0
    %1451 = vmatpush1.bf16.msra.mxu0 0
    %1452 = vmatprep.subr.bf16.mxu0 0
    %1453 = vmatpush1.bf16.msra.mxu0 0
    %1454 = vmatprep.subr.bf16.mxu0 0
    %1455 = vmatpush1.bf16.msra.mxu0 0
    %1456 = vmatprep.subr.bf16.mxu0 0
    %1457 = vmatpush1.bf16.msra.mxu0 0
    %1458 = vmatprep.subr.bf16.mxu0 0
    %1459 = vmatpush1.bf16.msra.mxu0 0
    %1460 = vmatprep.subr.bf16.mxu0 0
    %1461 = vmatpush1.bf16.msra.mxu0 0
    %1462 = vmatprep.subr.bf16.mxu0 0
    %1463 = vmatpush1.bf16.msra.mxu0 %v1374
    %1464 = vmatprep.subr.bf16.mxu0 0
    %1465 = vmatpush1.bf16.msra.mxu0 %v1373
    %1466 = vmatprep.subr.bf16.mxu0 0
    %1467 = vmatpush2.bf16.msra.mxu0 0
    %1468 = vmatprep.subr.bf16.mxu0 0
    %1469 = vmatpush2.bf16.msra.mxu0 0
    %1470 = vmatprep.subr.bf16.mxu0 0
    %1471 = vmatpush2.bf16.msra.mxu0 0
    %1472 = vmatprep.subr.bf16.mxu0 0
    %1473 = vmatpush2.bf16.msra.mxu0 0
    %1474 = vmatprep.subr.bf16.mxu0 0
    %1475 = vmatpush2.bf16.msra.mxu0 0
    %1476 = vmatprep.subr.bf16.mxu0 0
    %1477 = vmatpush2.bf16.msra.mxu0 0
    %1478 = vmatprep.subr.bf16.mxu0 0
    %1479 = vmatpush2.bf16.msra.mxu0 0
    %1480 = vmatprep.subr.bf16.mxu0 0
    %1481 = vmatpush2.bf16.msra.mxu0 0
    %1482 = vmatprep.mubr.bf16.mxu0 0
    %1483 = vmatmul.mubr.bf16.gmra.mxu0 %v1448
    %v1484 = vpop.f32.mrf.mxu0
    %v1485 = vadd.f32 0.0, %v1484
    %v1486 = vpop.f32.mrf.mxu0
    %v1487 = vpop.f32.mrf.mxu0
    %v1488 = vpop.f32.mrf.mxu0
    %1489 = vdwg.mxu0
    %v1490 = vadd.f32 %v1442, %v1485
    %v1491 = vxor.u32 %v1490, 2147483648
    %v1492 = vmul.f32 %v1491, 1.442695
    %v1493 = vpow.pop %v1492
    %v1494 = vadd.f32 %v1493, 1.0
    %v1495 = vrcp.pop %v1494
    %v1496 = vmul.f32 1.0, %v1495
    %v1497 = vtanh.pop %v1490
    %v1498 = vmul.f32 %v1496, %v1435
    %1500 = vrot.lane.b32.xlu0 %v1497, 32
    %v1501 = vpop.permute.xlu0 %1500
    %v1503 = vmul.f32 %v1496, %v1501
    %1505 = vrot.lane.b32.xlu0 %v1503, 32
    %v1506 = vpop.permute.xlu0 %1505
    %v1508 = vadd.f32 %v1498, %v1506
    %v1509 = vtanh.pop %v1508
    %1511 = vrot.lane.b32.xlu0 %v1509, 32
    %v1512 = vpop.permute.xlu0 %1511
    %v1514 = vmul.f32 %v1496, %v1512
    %v1515 = vld [vmem:[%s488] sm:$0x3]
    %v1516 = vpack.c.bf16 %v1514, %v1514
    %1518 = vrot.lane.b32.xlu0 %v1516, 64
    %v1519 = vpop.permute.xlu0 %1518
    %v1521 = vsel %vm196, %v1519, 0
    %1523 = vmatprep.subr.bf16.mxu0 0
    %1524 = vmatpush1.bf16.msra.mxu0 0
    %1525 = vmatprep.subr.bf16.mxu0 0
    %1526 = vmatpush1.bf16.msra.mxu0 0
    %1527 = vmatprep.subr.bf16.mxu0 0
    %1528 = vmatpush1.bf16.msra.mxu0 0
    %1529 = vmatprep.subr.bf16.mxu0 0
    %1530 = vmatpush1.bf16.msra.mxu0 0
    %1531 = vmatprep.subr.bf16.mxu0 0
    %1532 = vmatpush1.bf16.msra.mxu0 0
    %1533 = vmatprep.subr.bf16.mxu0 0
    %1534 = vmatpush1.bf16.msra.mxu0 0
    %1535 = vmatprep.subr.bf16.mxu0 0
    %1536 = vmatpush1.bf16.msra.mxu0 %v1374
    %1537 = vmatprep.subr.bf16.mxu0 0
    %1538 = vmatpush1.bf16.msra.mxu0 %v1373
    %1539 = vmatprep.subr.bf16.mxu0 0
    %1540 = vmatpush2.bf16.msra.mxu0 0
    %1541 = vmatprep.subr.bf16.mxu0 0
    %1542 = vmatpush2.bf16.msra.mxu0 0
    %1543 = vmatprep.subr.bf16.mxu0 0
    %1544 = vmatpush2.bf16.msra.mxu0 0
    %1545 = vmatprep.subr.bf16.mxu0 0
    %1546 = vmatpush2.bf16.msra.mxu0 0
    %1547 = vmatprep.subr.bf16.mxu0 0
    %1548 = vmatpush2.bf16.msra.mxu0 0
    %1549 = vmatprep.subr.bf16.mxu0 0
    %1550 = vmatpush2.bf16.msra.mxu0 0
    %1551 = vmatprep.subr.bf16.mxu0 0
    %1552 = vmatpush2.bf16.msra.mxu0 0
    %1553 = vmatprep.subr.bf16.mxu0 0
    %1554 = vmatpush2.bf16.msra.mxu0 0
    %1555 = vmatprep.mubr.bf16.mxu0 0
    %1556 = vmatmul.mubr.bf16.gmra.mxu0 %v1521
    %v1557 = vpop.f32.mrf.mxu0
    %v1558 = vadd.f32 0.0, %v1557
    %v1559 = vpop.f32.mrf.mxu0
    %v1560 = vpop.f32.mrf.mxu0
    %v1561 = vpop.f32.mrf.mxu0
    %1562 = vdwg.mxu0
    %v1563 = vadd.f32 %v1515, %v1558
    %v1564 = vxor.u32 %v1563, 2147483648
    %v1565 = vmul.f32 %v1564, 1.442695
    %v1566 = vpow.pop %v1565
    %v1567 = vadd.f32 %v1566, 1.0
    %v1568 = vrcp.pop %v1567
    %v1569 = vmul.f32 1.0, %v1568
    %v1570 = vtanh.pop %v1563
    %v1571 = vmul.f32 %v1569, %v1508
    %1573 = vrot.lane.b32.xlu0 %v1570, 32
    %v1574 = vpop.permute.xlu0 %1573
    %v1576 = vmul.f32 %v1569, %v1574
    %1578 = vrot.lane.b32.xlu0 %v1576, 32
    %v1579 = vpop.permute.xlu0 %1578
    %v1581 = vadd.f32 %v1571, %v1579
    %v1582 = vtanh.pop %v1581
    %1584 = vrot.lane.b32.xlu0 %v1582, 32
    %v1585 = vpop.permute.xlu0 %1584
    %v1587 = vmul.f32 %v1569, %v1585
    %v1588 = vld [vmem:[%s581] sm:$0x3]
    %v1589 = vpack.c.bf16 %v1587, %v1587
    %1591 = vrot.lane.b32.xlu0 %v1589, 64
    %v1592 = vpop.permute.xlu0 %1591
    %v1594 = vsel %vm196, %v1592, 0
    %1596 = vmatprep.subr.bf16.mxu0 0
    %1597 = vmatpush1.bf16.msra.mxu0 0
    %1598 = vmatprep.subr.bf16.mxu0 0
    %1599 = vmatpush1.bf16.msra.mxu0 0
    %1600 = vmatprep.subr.bf16.mxu0 0
    %1601 = vmatpush1.bf16.msra.mxu0 0
    %1602 = vmatprep.subr.bf16.mxu0 0
    %1603 = vmatpush1.bf16.msra.mxu0 0
    %1604 = vmatprep.subr.bf16.mxu0 0
    %1605 = vmatpush1.bf16.msra.mxu0 0
    %1606 = vmatprep.subr.bf16.mxu0 0
    %1607 = vmatpush1.bf16.msra.mxu0 0
    %1608 = vmatprep.subr.bf16.mxu0 0
    %1609 = vmatpush1.bf16.msra.mxu0 %v1374
    %1610 = vmatprep.subr.bf16.mxu0 0
    %1611 = vmatpush1.bf16.msra.mxu0 %v1373
    %1612 = vmatprep.subr.bf16.mxu0 0
    %1613 = vmatpush2.bf16.msra.mxu0 0
    %1614 = vmatprep.subr.bf16.mxu0 0
    %1615 = vmatpush2.bf16.msra.mxu0 0
    %1616 = vmatprep.subr.bf16.mxu0 0
    %1617 = vmatpush2.bf16.msra.mxu0 0
    %1618 = vmatprep.subr.bf16.mxu0 0
    %1619 = vmatpush2.bf16.msra.mxu0 0
    %1620 = vmatprep.subr.bf16.mxu0 0
    %1621 = vmatpush2.bf16.msra.mxu0 0
    %1622 = vmatprep.subr.bf16.mxu0 0
    %1623 = vmatpush2.bf16.msra.mxu0 0
    %1624 = vmatprep.subr.bf16.mxu0 0
    %1625 = vmatpush2.bf16.msra.mxu0 0
    %1626 = vmatprep.subr.bf16.mxu0 0
    %1627 = vmatpush2.bf16.msra.mxu0 0
    %1628 = vmatprep.mubr.bf16.mxu0 0
    %1629 = vmatmul.mubr.bf16.gmra.mxu0 %v1594
    %v1630 = vpop.f32.mrf.mxu0
    %v1631 = vadd.f32 0.0, %v1630
    %v1632 = vpop.f32.mrf.mxu0
    %v1633 = vpop.f32.mrf.mxu0
    %v1634 = vpop.f32.mrf.mxu0
    %1635 = vdwg.mxu0
    %v1636 = vadd.f32 %v1588, %v1631
    %v1637 = vxor.u32 %v1636, 2147483648
    %v1638 = vmul.f32 %v1637, 1.442695
    %v1639 = vpow.pop %v1638
    %v1640 = vadd.f32 %v1639, 1.0
    %v1641 = vrcp.pop %v1640
    %v1642 = vmul.f32 1.0, %v1641
    %v1643 = vtanh.pop %v1636
    %v1644 = vmul.f32 %v1642, %v1581
    %1646 = vrot.lane.b32.xlu0 %v1643, 32
    %v1647 = vpop.permute.xlu0 %1646
    %v1649 = vmul.f32 %v1642, %v1647
    %1651 = vrot.lane.b32.xlu0 %v1649, 32
    %v1652 = vpop.permute.xlu0 %1651
    %v1654 = vadd.f32 %v1644, %v1652
    %v1655 = vtanh.pop %v1654
    %1657 = vrot.lane.b32.xlu0 %v1655, 32
    %v1658 = vpop.permute.xlu0 %1657
    %v1660 = vmul.f32 %v1642, %v1658
    %v1661 = vld [vmem:[%s674] sm:$0x3]
    %v1662 = vpack.c.bf16 %v1660, %v1660
    %1664 = vrot.lane.b32.xlu0 %v1662, 64
    %v1665 = vpop.permute.xlu0 %1664
    %v1667 = vsel %vm196, %v1665, 0
    %1669 = vmatprep.subr.bf16.mxu0 0
    %1670 = vmatpush1.bf16.msra.mxu0 0
    %1671 = vmatprep.subr.bf16.mxu0 0
    %1672 = vmatpush1.bf16.msra.mxu0 0
    %1673 = vmatprep.subr.bf16.mxu0 0
    %1674 = vmatpush1.bf16.msra.mxu0 0
    %1675 = vmatprep.subr.bf16.mxu0 0
    %1676 = vmatpush1.bf16.msra.mxu0 0
    %1677 = vmatprep.subr.bf16.mxu0 0
    %1678 = vmatpush1.bf16.msra.mxu0 0
    %1679 = vmatprep.subr.bf16.mxu0 0
    %1680 = vmatpush1.bf16.msra.mxu0 0
    %1681 = vmatprep.subr.bf16.mxu0 0
    %1682 = vmatpush1.bf16.msra.mxu0 %v1374
    %1683 = vmatprep.subr.bf16.mxu0 0
    %1684 = vmatpush1.bf16.msra.mxu0 %v1373
    %1685 = vmatprep.subr.bf16.mxu0 0
    %1686 = vmatpush2.bf16.msra.mxu0 0
    %1687 = vmatprep.subr.bf16.mxu0 0
    %1688 = vmatpush2.bf16.msra.mxu0 0
    %1689 = vmatprep.subr.bf16.mxu0 0
    %1690 = vmatpush2.bf16.msra.mxu0 0
    %1691 = vmatprep.subr.bf16.mxu0 0
    %1692 = vmatpush2.bf16.msra.mxu0 0
    %1693 = vmatprep.subr.bf16.mxu0 0
    %1694 = vmatpush2.bf16.msra.mxu0 0
    %1695 = vmatprep.subr.bf16.mxu0 0
    %1696 = vmatpush2.bf16.msra.mxu0 0
    %1697 = vmatprep.subr.bf16.mxu0 0
    %1698 = vmatpush2.bf16.msra.mxu0 0
    %1699 = vmatprep.subr.bf16.mxu0 0
    %1700 = vmatpush2.bf16.msra.mxu0 0
    %1701 = vmatprep.mubr.bf16.mxu0 0
    %1702 = vmatmul.mubr.bf16.gmra.mxu0 %v1667
    %v1703 = vpop.f32.mrf.mxu0
    %v1704 = vadd.f32 0.0, %v1703
    %v1705 = vpop.f32.mrf.mxu0
    %v1706 = vpop.f32.mrf.mxu0
    %v1707 = vpop.f32.mrf.mxu0
    %1708 = vdwg.mxu0
    %v1709 = vadd.f32 %v1661, %v1704
    %v1710 = vxor.u32 %v1709, 2147483648
    %v1711 = vmul.f32 %v1710, 1.442695
    %v1712 = vpow.pop %v1711
    %v1713 = vadd.f32 %v1712, 1.0
    %v1714 = vrcp.pop %v1713
    %v1715 = vmul.f32 1.0, %v1714
    %v1716 = vtanh.pop %v1709
    %v1717 = vmul.f32 %v1715, %v1654
    %1719 = vrot.lane.b32.xlu0 %v1716, 32
    %v1720 = vpop.permute.xlu0 %1719
    %v1722 = vmul.f32 %v1715, %v1720
    %1724 = vrot.lane.b32.xlu0 %v1722, 32
    %v1725 = vpop.permute.xlu0 %1724
    %v1727 = vadd.f32 %v1717, %v1725
    %v1728 = vtanh.pop %v1727
    %1730 = vrot.lane.b32.xlu0 %v1728, 32
    %v1731 = vpop.permute.xlu0 %1730
    %v1733 = vmul.f32 %v1715, %v1731
    %v1734 = vld [vmem:[%s767] sm:$0x3]
    %v1735 = vpack.c.bf16 %v1733, %v1733
    %1737 = vrot.lane.b32.xlu0 %v1735, 64
    %v1738 = vpop.permute.xlu0 %1737
    %v1740 = vsel %vm196, %v1738, 0
    %1742 = vmatprep.subr.bf16.mxu0 0
    %1743 = vmatpush1.bf16.msra.mxu0 0
    %1744 = vmatprep.subr.bf16.mxu0 0
    %1745 = vmatpush1.bf16.msra.mxu0 0
    %1746 = vmatprep.subr.bf16.mxu0 0
    %1747 = vmatpush1.bf16.msra.mxu0 0
    %1748 = vmatprep.subr.bf16.mxu0 0
    %1749 = vmatpush1.bf16.msra.mxu0 0
    %1750 = vmatprep.subr.bf16.mxu0 0
    %1751 = vmatpush1.bf16.msra.mxu0 0
    %1752 = vmatprep.subr.bf16.mxu0 0
    %1753 = vmatpush1.bf16.msra.mxu0 0
    %1754 = vmatprep.subr.bf16.mxu0 0
    %1755 = vmatpush1.bf16.msra.mxu0 %v1374
    %1756 = vmatprep.subr.bf16.mxu0 0
    %1757 = vmatpush1.bf16.msra.mxu0 %v1373
    %1758 = vmatprep.subr.bf16.mxu0 0
    %1759 = vmatpush2.bf16.msra.mxu0 0
    %1760 = vmatprep.subr.bf16.mxu0 0
    %1761 = vmatpush2.bf16.msra.mxu0 0
    %1762 = vmatprep.subr.bf16.mxu0 0
    %1763 = vmatpush2.bf16.msra.mxu0 0
    %1764 = vmatprep.subr.bf16.mxu0 0
    %1765 = vmatpush2.bf16.msra.mxu0 0
    %1766 = vmatprep.subr.bf16.mxu0 0
    %1767 = vmatpush2.bf16.msra.mxu0 0
    %1768 = vmatprep.subr.bf16.mxu0 0
    %1769 = vmatpush2.bf16.msra.mxu0 0
    %1770 = vmatprep.subr.bf16.mxu0 0
    %1771 = vmatpush2.bf16.msra.mxu0 0
    %1772 = vmatprep.subr.bf16.mxu0 0
    %1773 = vmatpush2.bf16.msra.mxu0 0
    %1774 = vmatprep.mubr.bf16.mxu0 0
    %1775 = vmatmul.mubr.bf16.gmra.mxu0 %v1740
    %v1776 = vpop.f32.mrf.mxu0
    %v1777 = vadd.f32 0.0, %v1776
    %v1778 = vpop.f32.mrf.mxu0
    %v1779 = vpop.f32.mrf.mxu0
    %v1780 = vpop.f32.mrf.mxu0
    %1781 = vdwg.mxu0
    %v1782 = vadd.f32 %v1734, %v1777
    %v1783 = vxor.u32 %v1782, 2147483648
    %v1784 = vmul.f32 %v1783, 1.442695
    %v1785 = vpow.pop %v1784
    %v1786 = vadd.f32 %v1785, 1.0
    %v1787 = vrcp.pop %v1786
    %v1788 = vmul.f32 1.0, %v1787
    %v1789 = vtanh.pop %v1782
    %v1790 = vmul.f32 %v1788, %v1727
    %1792 = vrot.lane.b32.xlu0 %v1789, 32
    %v1793 = vpop.permute.xlu0 %1792
    %v1795 = vmul.f32 %v1788, %v1793
    %1797 = vrot.lane.b32.xlu0 %v1795, 32
    %v1798 = vpop.permute.xlu0 %1797
    %v1800 = vadd.f32 %v1790, %v1798
    %v1801 = vtanh.pop %v1800
    %1803 = vrot.lane.b32.xlu0 %v1801, 32
    %v1804 = vpop.permute.xlu0 %1803
    %v1806 = vmul.f32 %v1788, %v1804
    %v1807 = vld [vmem:[%s860] sm:$0x3]
    %v1808 = vpack.c.bf16 %v1806, %v1806
    %1810 = vrot.lane.b32.xlu0 %v1808, 64
    %v1811 = vpop.permute.xlu0 %1810
    %v1813 = vsel %vm196, %v1811, 0
    %1815 = vmatprep.subr.bf16.mxu0 0
    %1816 = vmatpush1.bf16.msra.mxu0 0
    %1817 = vmatprep.subr.bf16.mxu0 0
    %1818 = vmatpush1.bf16.msra.mxu0 0
    %1819 = vmatprep.subr.bf16.mxu0 0
    %1820 = vmatpush1.bf16.msra.mxu0 0
    %1821 = vmatprep.subr.bf16.mxu0 0
    %1822 = vmatpush1.bf16.msra.mxu0 0
    %1823 = vmatprep.subr.bf16.mxu0 0
    %1824 = vmatpush1.bf16.msra.mxu0 0
    %1825 = vmatprep.subr.bf16.mxu0 0
    %1826 = vmatpush1.bf16.msra.mxu0 0
    %1827 = vmatprep.subr.bf16.mxu0 0
    %1828 = vmatpush1.bf16.msra.mxu0 %v1374
    %1829 = vmatprep.subr.bf16.mxu0 0
    %1830 = vmatpush1.bf16.msra.mxu0 %v1373
    %1831 = vmatprep.subr.bf16.mxu0 0
    %1832 = vmatpush2.bf16.msra.mxu0 0
    %1833 = vmatprep.subr.bf16.mxu0 0
    %1834 = vmatpush2.bf16.msra.mxu0 0
    %1835 = vmatprep.subr.bf16.mxu0 0
    %1836 = vmatpush2.bf16.msra.mxu0 0
    %1837 = vmatprep.subr.bf16.mxu0 0
    %1838 = vmatpush2.bf16.msra.mxu0 0
    %1839 = vmatprep.subr.bf16.mxu0 0
    %1840 = vmatpush2.bf16.msra.mxu0 0
    %1841 = vmatprep.subr.bf16.mxu0 0
    %1842 = vmatpush2.bf16.msra.mxu0 0
    %1843 = vmatprep.subr.bf16.mxu0 0
    %1844 = vmatpush2.bf16.msra.mxu0 0
    %1845 = vmatprep.subr.bf16.mxu0 0
    %1846 = vmatpush2.bf16.msra.mxu0 0
    %1847 = vmatprep.mubr.bf16.mxu0 0
    %1848 = vmatmul.mubr.bf16.gmra.mxu0 %v1813
    %v1849 = vpop.f32.mrf.mxu0
    %v1850 = vadd.f32 0.0, %v1849
    %v1851 = vpop.f32.mrf.mxu0
    %v1852 = vpop.f32.mrf.mxu0
    %v1853 = vpop.f32.mrf.mxu0
    %1854 = vdwg.mxu0
    %v1855 = vadd.f32 %v1807, %v1850
    %v1856 = vxor.u32 %v1855, 2147483648
    %v1857 = vmul.f32 %v1856, 1.442695
    %v1858 = vpow.pop %v1857
    %v1859 = vadd.f32 %v1858, 1.0
    %v1860 = vrcp.pop %v1859
    %v1861 = vmul.f32 1.0, %v1860
    %v1862 = vtanh.pop %v1855
    %v1863 = vmul.f32 %v1861, %v1800
    %1865 = vrot.lane.b32.xlu0 %v1862, 32
    %v1866 = vpop.permute.xlu0 %1865
    %v1868 = vmul.f32 %v1861, %v1866
    %1870 = vrot.lane.b32.xlu0 %v1868, 32
    %v1871 = vpop.permute.xlu0 %1870
    %v1873 = vadd.f32 %v1863, %v1871
    %v1874 = vtanh.pop %v1873
    %1876 = vrot.lane.b32.xlu0 %v1874, 32
    %v1877 = vpop.permute.xlu0 %1876
    %v1879 = vmul.f32 %v1861, %v1877
    %v1880 = vld [vmem:[%s953] sm:$0x3]
    %v1881 = vpack.c.bf16 %v1879, %v1879
    %1883 = vrot.lane.b32.xlu0 %v1881, 64
    %v1884 = vpop.permute.xlu0 %1883
    %v1886 = vsel %vm196, %v1884, 0
    %1888 = vmatprep.subr.bf16.mxu0 0
    %1889 = vmatpush1.bf16.msra.mxu0 0
    %1890 = vmatprep.subr.bf16.mxu0 0
    %1891 = vmatpush1.bf16.msra.mxu0 0
    %1892 = vmatprep.subr.bf16.mxu0 0
    %1893 = vmatpush1.bf16.msra.mxu0 0
    %1894 = vmatprep.subr.bf16.mxu0 0
    %1895 = vmatpush1.bf16.msra.mxu0 0
    %1896 = vmatprep.subr.bf16.mxu0 0
    %1897 = vmatpush1.bf16.msra.mxu0 0
    %1898 = vmatprep.subr.bf16.mxu0 0
    %1899 = vmatpush1.bf16.msra.mxu0 0
    %1900 = vmatprep.subr.bf16.mxu0 0
    %1901 = vmatpush1.bf16.msra.mxu0 %v1374
    %1902 = vmatprep.subr.bf16.mxu0 0
    %1903 = vmatpush1.bf16.msra.mxu0 %v1373
    %1904 = vmatprep.subr.bf16.mxu0 0
    %1905 = vmatpush2.bf16.msra.mxu0 0
    %1906 = vmatprep.subr.bf16.mxu0 0
    %1907 = vmatpush2.bf16.msra.mxu0 0
    %1908 = vmatprep.subr.bf16.mxu0 0
    %1909 = vmatpush2.bf16.msra.mxu0 0
    %1910 = vmatprep.subr.bf16.mxu0 0
    %1911 = vmatpush2.bf16.msra.mxu0 0
    %1912 = vmatprep.subr.bf16.mxu0 0
    %1913 = vmatpush2.bf16.msra.mxu0 0
    %1914 = vmatprep.subr.bf16.mxu0 0
    %1915 = vmatpush2.bf16.msra.mxu0 0
    %1916 = vmatprep.subr.bf16.mxu0 0
    %1917 = vmatpush2.bf16.msra.mxu0 0
    %1918 = vmatprep.subr.bf16.mxu0 0
    %1919 = vmatpush2.bf16.msra.mxu0 0
    %1920 = vmatprep.mubr.bf16.mxu0 0
    %1921 = vmatmul.mubr.bf16.gmra.mxu0 %v1886
    %v1922 = vpop.f32.mrf.mxu0
    %v1923 = vadd.f32 0.0, %v1922
    %v1924 = vpop.f32.mrf.mxu0
    %v1925 = vpop.f32.mrf.mxu0
    %v1926 = vpop.f32.mrf.mxu0
    %1927 = vdwg.mxu0
    %v1928 = vadd.f32 %v1880, %v1923
    %v1929 = vxor.u32 %v1928, 2147483648
    %v1930 = vmul.f32 %v1929, 1.442695
    %v1931 = vpow.pop %v1930
    %v1932 = vadd.f32 %v1931, 1.0
    %v1933 = vrcp.pop %v1932
    %v1934 = vmul.f32 1.0, %v1933
    %v1935 = vtanh.pop %v1928
    %v1936 = vmul.f32 %v1934, %v1873
    %1938 = vrot.lane.b32.xlu0 %v1935, 32
    %v1939 = vpop.permute.xlu0 %1938
    %v1941 = vmul.f32 %v1934, %v1939
    %1943 = vrot.lane.b32.xlu0 %v1941, 32
    %v1944 = vpop.permute.xlu0 %1943
    %v1946 = vadd.f32 %v1936, %v1944
    %v1947 = vtanh.pop %v1946
    %1949 = vrot.lane.b32.xlu0 %v1947, 32
    %v1950 = vpop.permute.xlu0 %1949
    %v1952 = vmul.f32 %v1934, %v1950
    %v1953 = vtanh.pop %v1952
    %v1954 = vpack.c.bf16 %v1953, %v1953
    %v1955 = vld [vmem:[#allocation10 + $0x20] sm:$0xf]
    %v1956 = vld [vmem:[#allocation10 + $0x24] sm:$0xf]
    %v1957 = vld [vmem:[#allocation10 + $0x28] sm:$0xf]
    %v1958 = vld [vmem:[#allocation10 + $0x2c] sm:$0xf]
    %1960 = vrot.lane.b32.xlu0 %v1954, 64
    %v1961 = vpop.permute.xlu0 %1960
    %v1966 = vunpack.c.l.b16 %v1955
    %v1967 = vunpack.c.l.b16 %v1956
    %v1968 = vunpack.c.l.b16 %v1957
    %v1969 = vunpack.c.l.b16 %v1958
    %v1970 = vpack.c.b16 %v1967, %v1966
    %v1971 = vpack.c.b16 %v1969, %v1968
    %v1975 = vsel %vm196, %v1961, 0
    %1977 = vmatprep.subr.bf16.mxu0 0
    %1978 = vmatpush1.bf16.msra.mxu0 0
    %1979 = vmatprep.subr.bf16.mxu0 0
    %1980 = vmatpush1.bf16.msra.mxu0 0
    %1981 = vmatprep.subr.bf16.mxu0 0
    %1982 = vmatpush1.bf16.msra.mxu0 0
    %1983 = vmatprep.subr.bf16.mxu0 0
    %1984 = vmatpush1.bf16.msra.mxu0 0
    %1985 = vmatprep.subr.bf16.mxu0 0
    %1986 = vmatpush1.bf16.msra.mxu0 0
    %1987 = vmatprep.subr.bf16.mxu0 0
    %1988 = vmatpush1.bf16.msra.mxu0 0
    %1989 = vmatprep.subr.bf16.mxu0 0
    %1990 = vmatpush1.bf16.msra.mxu0 %v1971
    %1991 = vmatprep.subr.bf16.mxu0 0
    %1992 = vmatpush1.bf16.msra.mxu0 %v1970
    %1993 = vmatprep.subr.bf16.mxu0 0
    %1994 = vmatpush2.bf16.msra.mxu0 0
    %1995 = vmatprep.subr.bf16.mxu0 0
    %1996 = vmatpush2.bf16.msra.mxu0 0
    %1997 = vmatprep.subr.bf16.mxu0 0
    %1998 = vmatpush2.bf16.msra.mxu0 0
    %1999 = vmatprep.subr.bf16.mxu0 0
    %2000 = vmatpush2.bf16.msra.mxu0 0
    %2001 = vmatprep.subr.bf16.mxu0 0
    %2002 = vmatpush2.bf16.msra.mxu0 0
    %2003 = vmatprep.subr.bf16.mxu0 0
    %2004 = vmatpush2.bf16.msra.mxu0 0
    %2005 = vmatprep.subr.bf16.mxu0 0
    %2006 = vmatpush2.bf16.msra.mxu0 0
    %2007 = vmatprep.subr.bf16.mxu0 0
    %2008 = vmatpush2.bf16.msra.mxu0 0
    %2009 = vmatprep.mubr.bf16.mxu0 0
    %2010 = vmatmul.mubr.bf16.gmra.mxu0 %v1975
    %v2011 = vpop.f32.mrf.mxu0
    %v2012 = vadd.f32 0.0, %v2011
    %v2013 = vpop.f32.mrf.mxu0
    %v2014 = vpop.f32.mrf.mxu0
    %v2015 = vpop.f32.mrf.mxu0
    %2016 = vdwg.mxu0
    %v2017 = vadd.f32 %v1168, %v2012
    %v2018 = vpack.c.bf16 %v1947, %v1947
    %v2019 = vld [vmem:[#allocation10 + $0x30] sm:$0xf]
    %v2020 = vld [vmem:[#allocation10 + $0x34] sm:$0xf]
    %v2021 = vld [vmem:[#allocation10 + $0x38] sm:$0xf]
    %v2022 = vld [vmem:[#allocation10 + $0x3c] sm:$0xf]
    %2024 = vrot.lane.b32.xlu0 %v2018, 96
    %v2025 = vpop.permute.xlu0 %2024
    %v2030 = vunpack.c.l.b16 %v2019
    %v2031 = vunpack.c.l.b16 %v2020
    %v2032 = vunpack.c.l.b16 %v2021
    %v2033 = vunpack.c.l.b16 %v2022
    %v2034 = vpack.c.b16 %v2031, %v2030
    %v2035 = vpack.c.b16 %v2033, %v2032
    %v2039 = vsel %vm196, %v2025, 0
    %2041 = vmatprep.subr.bf16.mxu0 0
    %2042 = vmatpush1.bf16.msra.mxu0 0
    %2043 = vmatprep.subr.bf16.mxu0 0
    %2044 = vmatpush1.bf16.msra.mxu0 0
    %2045 = vmatprep.subr.bf16.mxu0 0
    %2046 = vmatpush1.bf16.msra.mxu0 0
    %2047 = vmatprep.subr.bf16.mxu0 0
    %2048 = vmatpush1.bf16.msra.mxu0 0
    %2049 = vmatprep.subr.bf16.mxu0 0
    %2050 = vmatpush1.bf16.msra.mxu0 0
    %2051 = vmatprep.subr.bf16.mxu0 0
    %2052 = vmatpush1.bf16.msra.mxu0 0
    %2053 = vmatprep.subr.bf16.mxu0 0
    %2054 = vmatpush1.bf16.msra.mxu0 %v2035
    %2055 = vmatprep.subr.bf16.mxu0 0
    %2056 = vmatpush1.bf16.msra.mxu0 %v2034
    %2057 = vmatprep.subr.bf16.mxu0 0
    %2058 = vmatpush2.bf16.msra.mxu0 0
    %2059 = vmatprep.subr.bf16.mxu0 0
    %2060 = vmatpush2.bf16.msra.mxu0 0
    %2061 = vmatprep.subr.bf16.mxu0 0
    %2062 = vmatpush2.bf16.msra.mxu0 0
    %2063 = vmatprep.subr.bf16.mxu0 0
    %2064 = vmatpush2.bf16.msra.mxu0 0
    %2065 = vmatprep.subr.bf16.mxu0 0
    %2066 = vmatpush2.bf16.msra.mxu0 0
    %2067 = vmatprep.subr.bf16.mxu0 0
    %2068 = vmatpush2.bf16.msra.mxu0 0
    %2069 = vmatprep.subr.bf16.mxu0 0
    %2070 = vmatpush2.bf16.msra.mxu0 0
    %2071 = vmatprep.subr.bf16.mxu0 0
    %2072 = vmatpush2.bf16.msra.mxu0 0
    %2073 = vmatprep.mubr.bf16.mxu0 0
    %2074 = vmatmul.mubr.bf16.gmra.mxu0 %v2039
    %v2075 = vpop.f32.mrf.mxu0
    %v2076 = vadd.f32 0.0, %v2075
    %v2077 = vpop.f32.mrf.mxu0
    %v2078 = vpop.f32.mrf.mxu0
    %v2079 = vpop.f32.mrf.mxu0
    %2080 = vdwg.mxu0
    %v2081 = vadd.f32 %v2017, %v2076
    %v2082 = vld [vmem:[%s5] sm:$0x1]
    %v2084 = vlaneseq
    %v2085 = vshrl.u32 %v2084, 7
    %v2086 = vsub.s32 0, %v2085
    %v2087 = vrot.slane %v2082, %v2086
    %v2089 = vadd.f32 %v2081, %v2087
    %2090 = vst [vmem:[#allocation12] sm:$0x3] %v2089
    // Predicated region
    $region42: #{tpu_custom_call.1} parent=1 // pred_check
      _
    $region43: #{tpu_custom_call.1} parent=1 // pred_check_branch
      %2092 = sbr.rel (0) target = $region45
    $region44: #{tpu_custom_call.1} parent=1 // pred_region
      %s2094 = ssub.s32 32, 32
      %2095 = vsyncadd [#allocation6], %s2094
      %s2097 = sshll.u32 [#allocation12], 4
      %s2098 = int_to_ptr.vmem [resolvable:$true] %s2097
      %2100 = dma.vmem_to_hbm [thread:$0]  %s2098, 32, %s6, [#allocation6]
    $region45: #{tpu_custom_call.1} parent=1 // pred_fallthru
      _
    // Predicated region
    $region46: #{tpu_custom_call.1} parent=1 // pred_check
      _
    $region47: #{tpu_custom_call.1} parent=1 // pred_check_branch
      %2102 = sbr.rel (0) target = $region49
    $region48: #{tpu_custom_call.1} parent=1 // pred_region
      %2103 = dma.done [#allocation6], 32
    $region49: #{tpu_custom_call.1} parent=1 // pred_fallthru
      _
    %2104 = vsyncpa [#allocation5], 1
    %2105 = vsyncpa [#allocation8], 1
    %2106 = vsyncpa [#allocation11], 1
    %2107 = vsyncpa [#allocation6], 1

</llo_original>
